<compile_context>
chip_gen: v6e
topology: v6e:2x2x1
jax: 0.10.0
libtpu: 0.0.40
codegen_flags: <defaults>
</compile_context>

<pallas_src>
import math
from functools import partial

import jax
import jax.numpy as jnp
import numpy as np
from jax.experimental import pallas as pl
from jax.experimental.pallas import tpu as pltpu

LN_EPS = 1e-5  # nn.LayerNorm default eps


# ----------------------------- in-kernel math ------------------------------
def _erf(x):
    # Abramowitz & Stegun 7.1.26 rational approximation, |error| < 1.5e-7.
    # The divide goes through the EUP (approx reciprocal), exp also EUP.
    a1, a2, a3, a4, a5 = 0.254829592, -0.284496736, 1.421413741, -1.453152027, 1.061405429
    p = 0.3275911
    s = jnp.where(x >= 0.0, 1.0, -1.0)
    z = jnp.abs(x)
    t = pl.reciprocal(1.0 + p * z, approx=True)
    poly = ((((a5 * t + a4) * t + a3) * t + a2) * t + a1) * t
    return s * (1.0 - poly * jnp.exp(-z * z))


def _gelu(x):
    # exact (erf-based) GELU, PyTorch nn.GELU default
    return 0.5 * x * (1.0 + _erf(x * 0.7071067811865476))


def _layer_norm(x, w, b):
    mu = jnp.mean(x, axis=-1, keepdims=True)
    xc = x - mu
    var = jnp.mean(xc * xc, axis=-1, keepdims=True)
    return xc * jax.lax.rsqrt(var + LN_EPS) * w + b


# ------------------------------ fused kernel --------------------------------
def _decoder_kernel(x_ref, ln1w, ln1b, wqkv, wproj, bproj, ln2w, ln2b,
                    w1, b1, w2, b2, normw, normb, headw, headb,
                    o_ref, xacc, ctx,
                    *, num_heads, head_dim, tokens, ret_tokens):
    bf16 = jnp.bfloat16
    f32 = jnp.float32
    D = num_heads * head_dim
    layer = pl.program_id(1)

    # First layer for this batch element: load the residual stream into scratch.
    @pl.when(layer == 0)
    def _():
        xacc[...] = x_ref[0]

    x = xacc[...]                                                  # (N, D) f32

    # ---------------- Multi-head self-attention ----------------
    h = _layer_norm(x, ln1w[0], ln1b[0])
    # One K=D matmul for the whole QKV projection (bf16 in, f32 accumulate).
    qkv = jnp.dot(h.astype(bf16), wqkv[0], preferred_element_type=f32)  # (N, 3D)

    scale = head_dim ** -0.5
    for hh in range(num_heads):                  # static unroll; K=head_dim is inherent
        lo = hh * head_dim
        hi = lo + head_dim
        q = (qkv[:, lo:hi] * scale).astype(bf16)
        k = qkv[:, D + lo:D + hi].astype(bf16)
        v = qkv[:, 2 * D + lo:2 * D + hi].astype(bf16)
        s = jax.lax.dot_general(q, k, (((1,), (1,)), ((), ())),
                                preferred_element_type=f32)          # (N, N)
        s = s - jnp.max(s, axis=-1, keepdims=True)
        e = jnp.exp(s)
        p = e * pl.reciprocal(jnp.sum(e, axis=-1, keepdims=True), approx=True)
        o = jnp.dot(p.astype(bf16), v, preferred_element_type=f32)   # (N, hd)
        ctx[:, lo:hi] = o            # pack heads contiguously -> (N, D) buffer

    # ONE K=D output projection for all heads.
    attn = jnp.dot(ctx[...].astype(bf16), wproj[0], preferred_element_type=f32)
    x = x + attn + bproj[0]

    # ------------------------- MLP ------------------------------
    h2 = _layer_norm(x, ln2w[0], ln2b[0])
    m = jnp.dot(h2.astype(bf16), w1[0], preferred_element_type=f32) + b1[0]
    m = _gelu(m)
    m = jnp.dot(m.astype(bf16), w2[0], preferred_element_type=f32) + b2[0]
    x = x + m

    xacc[...] = x                                # carry residual stream to next layer

    # --------- final norm + head, fused after the last layer ---------
    @pl.when(layer == pl.num_programs(1) - 1)
    def _():
        xt = x[tokens - ret_tokens:, :]                              # (T, D)
        hn = _layer_norm(xt, normw[...], normb[...])
        out = jnp.dot(hn.astype(bf16), headw[...],
                      preferred_element_type=f32) + headb[...]       # (T, Cpad)
        o_ref[0] = out.astype(o_ref.dtype)


# ------------------------------ wrapper -------------------------------------
def decoder_forward(x, params, return_token_num, num_heads):
    """PretrainVisionTransformerDecoder.forward(x, return_token_num)."""
    B, N, D = x.shape
    depth, _, hidden = params["w1"].shape
    C = params["head_w"].shape[1]
    Cp = 128 * ((C + 127) // 128)            # pad head output -> lane-dense stores
    T = return_token_num if return_token_num > 0 else N
    head_dim = D // num_heads
    bf16, f32 = jnp.bfloat16, jnp.float32

    # Weight matrices feed the MXU: store / DMA them in bf16 (f32 accumulation).
    wqkv = params["wqkv"].astype(bf16)
    wproj = params["wproj"].astype(bf16)
    w1 = params["w1"].astype(bf16)
    w2 = params["w2"].astype(bf16)
    # LN params / biases stay f32 (VPU math kept in f32, including on v5e).
    ln1w = params["ln1_w"].reshape(depth, 1, D)
    ln1b = params["ln1_b"].reshape(depth, 1, D)
    bproj = params["bproj"].reshape(depth, 1, D)
    ln2w = params["ln2_w"].reshape(depth, 1, D)
    ln2b = params["ln2_b"].reshape(depth, 1, D)
    b1 = params["b1"].reshape(depth, 1, hidden)
    b2 = params["b2"].reshape(depth, 1, D)
    normw = params["norm_w"].reshape(1, D)
    normb = params["norm_b"].reshape(1, D)
    headw = jnp.zeros((D, Cp), bf16).at[:, :C].set(params["head_w"].astype(bf16))
    headb = jnp.zeros((1, Cp), f32).at[:, :C].set(params["head_b"][None, :])

    kern = partial(_decoder_kernel, num_heads=num_heads, head_dim=head_dim,
                   tokens=N, ret_tokens=T)

    lyr = lambda b, l: (l, 0, 0)     # per-layer stacked params (vary along depth axis)
    cst = lambda b, l: (0, 0)        # layer-invariant params (norm / head)

    out = pl.pallas_call(
        kern,
        out_shape=jax.ShapeDtypeStruct((B, T, Cp), f32),
        grid=(B, depth),                                  # depth = sequential axis, last
        in_specs=[
            pl.BlockSpec((1, N, D), lambda b, l: (b, 0, 0)),   # x (resident across depth)
            pl.BlockSpec((1, 1, D), lyr),                      # ln1_w
            pl.BlockSpec((1, 1, D), lyr),                      # ln1_b
            pl.BlockSpec((1, D, 3 * D), lyr),                  # wqkv
            pl.BlockSpec((1, D, D), lyr),                      # wproj
            pl.BlockSpec((1, 1, D), lyr),                      # bproj
            pl.BlockSpec((1, 1, D), lyr),                      # ln2_w
            pl.BlockSpec((1, 1, D), lyr),                      # ln2_b
            pl.BlockSpec((1, D, hidden), lyr),                 # w1
            pl.BlockSpec((1, 1, hidden), lyr),                 # b1
            pl.BlockSpec((1, hidden, D), lyr),                 # w2
            pl.BlockSpec((1, 1, D), lyr),                      # b2
            pl.BlockSpec((1, D), cst),                         # norm_w
            pl.BlockSpec((1, D), cst),                         # norm_b
            pl.BlockSpec((D, Cp), cst),                        # head_w (lane-padded)
            pl.BlockSpec((1, Cp), cst),                        # head_b (lane-padded)
        ],
        out_specs=pl.BlockSpec((1, T, Cp), lambda b, l: (b, 0, 0)),  # written at last layer
        scratch_shapes=[
            pltpu.VMEM((N, D), f32),   # residual stream, persists across the depth axis
            pltpu.VMEM((N, D), f32),   # contiguous per-head attention context buffer
        ],
        compiler_params=pltpu.CompilerParams(
            dimension_semantics=("parallel", "arbitrary"),
            vmem_limit_bytes=32 * 1024 * 1024),
    )(x, ln1w, ln1b, wqkv, wproj, bproj, ln2w, ln2b, w1, b1, w2, b2,
      normw, normb, headw, headb)
    return out[:, :, :C]


# ------------------------- deterministic parameters ------------------------
def init_params(key, *, embed_dim, depth, mlp_ratio, num_classes):
    hidden = int(embed_dim * mlp_ratio)
    D = embed_dim

    def xavier(k, shape, fin, fout):
        bound = math.sqrt(6.0 / (fin + fout))
        return jax.random.uniform(k, shape, jnp.float32, -bound, bound)

    k1, k2, k3, k4, kh = jax.random.split(key, 5)
    return dict(
        ln1_w=jnp.ones((depth, D), jnp.float32),
        ln1_b=jnp.zeros((depth, D), jnp.float32),
        wqkv=xavier(k1, (depth, D, 3 * D), D, 3 * D),   # qkv_bias=False
        wproj=xavier(k2, (depth, D, D), D, D),
        bproj=jnp.zeros((depth, D), jnp.float32),
        ln2_w=jnp.ones((depth, D), jnp.float32),
        ln2_b=jnp.zeros((depth, D), jnp.float32),
        w1=xavier(k3, (depth, D, hidden), D, hidden),
        b1=jnp.zeros((depth, hidden), jnp.float32),
        w2=xavier(k4, (depth, hidden, D), hidden, D),
        b2=jnp.zeros((depth, D), jnp.float32),
        norm_w=jnp.ones((D,), jnp.float32),
        norm_b=jnp.zeros((D,), jnp.float32),
        head_w=xavier(kh, (D, num_classes), D, num_classes),
        head_b=jnp.zeros((num_classes,), jnp.float32),
    )


# ------------------------------ pure-JAX reference ---------------------------
def reference_forward(x, params, return_token_num, num_heads, mxu_dtype=None):
    """Exact PyTorch semantics when mxu_dtype=None; mxu_dtype=bf16 mirrors the
    kernel's MXU input precision (f32 accumulation) for a tight comparison."""
    f32 = jnp.float32

    def c(a):
        return a.astype(mxu_dtype) if mxu_dtype is not None else a

    def mm(a, b):
        return jnp.einsum("...ij,jk->...ik", c(a), c(b), preferred_element_type=f32)

    def ln(t, w, b):
        mu = t.mean(-1, keepdims=True)
        v = ((t - mu) ** 2).mean(-1, keepdims=True)
        return (t - mu) / jnp.sqrt(v + LN_EPS) * w + b

    with jax.default_matmul_precision("float32"):
        B, N, D = x.shape
        hd = D // num_heads
        depth = params["wqkv"].shape[0]
        for l in range(depth):
            h = ln(x, params["ln1_w"][l], params["ln1_b"][l])
            qkv = mm(h, params["wqkv"][l]).reshape(B, N, 3, num_heads, hd)
            qkv = qkv.transpose(2, 0, 3, 1, 4)
            q, k, v = qkv[0] * hd ** -0.5, qkv[1], qkv[2]
            att = jax.nn.softmax(
                jnp.einsum("bhnd,bhmd->bhnm", c(q), c(k), preferred_element_type=f32),
                axis=-1)
            o = jnp.einsum("bhnm,bhmd->bhnd", c(att), c(v), preferred_element_type=f32)
            o = o.transpose(0, 2, 1, 3).reshape(B, N, D)
            x = x + mm(o, params["wproj"][l]) + params["bproj"][l]
            h2 = ln(x, params["ln2_w"][l], params["ln2_b"][l])
            m = jax.nn.gelu(mm(h2, params["w1"][l]) + params["b1"][l], approximate=False)
            x = x + mm(m, params["w2"][l]) + params["b2"][l]
        if return_token_num > 0:
            x = x[:, -return_token_num:]
        x = ln(x, params["norm_w"], params["norm_b"])
        return mm(x, params["head_w"]) + params["head_b"]


# ---------------------------------- main ------------------------------------
if __name__ == "__main__":
    # Small config consistent with the module's constraints (num_classes == 3*p^2).
    patch_size = 4
    num_classes = 3 * patch_size ** 2      # 48
    embed_dim, depth, num_heads, mlp_ratio = 32, 2, 4, 4.0
    B, N, return_token_num = 2, 8, 3

    key = jax.random.PRNGKey(0)
    kx, kp = jax.random.split(key)
    x = jax.random.normal(kx, (B, N, embed_dim), jnp.float32)
    params = init_params(kp, embed_dim=embed_dim, depth=depth,
                         mlp_ratio=mlp_ratio, num_classes=num_classes)

    out = jax.block_until_ready(decoder_forward(x, params, return_token_num, num_heads))
    assert out.shape == (B, return_token_num, num_classes), out.shape

    out_np = np.asarray(out)

    # Tight check vs. a reference that mirrors the kernel's bf16-in/f32-acc MXU precision.
    ref_bf16 = np.asarray(jax.block_until_ready(
        reference_forward(x, params, return_token_num, num_heads, mxu_dtype=jnp.bfloat16)))
    d_bf16 = float(np.max(np.abs(out_np - ref_bf16)))
    assert np.allclose(out_np, ref_bf16, atol=2e-2, rtol=2e-2), f"bf16-matched diff={d_bf16}"

    # Loose check vs. the exact f32 (PyTorch-semantics) reference; the gap is the
    # deliberate bf16 MXU-input precision (f32 accumulation) from the perf review.
    ref_f32 = np.asarray(jax.block_until_ready(
        reference_forward(x, params, return_token_num, num_heads, mxu_dtype=None)))
    d_f32 = float(np.max(np.abs(out_np - ref_f32)))
    assert np.allclose(out_np, ref_f32, atol=6e-2, rtol=6e-2), f"exact-f32 diff={d_f32}"

    print("KERNEL_OK")
</pallas_src>

<mosaic_0001>
module attributes {stable_mosaic.version = 11 : i64} {
  func.func @_decoder_kernel(%arg0: i32, %arg1: i32, %arg2: memref<1x8x32xf32, #tpu.memory_space<vmem>>, %arg3: memref<1x1x32xf32, #tpu.memory_space<vmem>>, %arg4: memref<1x1x32xf32, #tpu.memory_space<vmem>>, %arg5: memref<1x32x96xbf16, #tpu.memory_space<vmem>>, %arg6: memref<1x32x32xbf16, #tpu.memory_space<vmem>>, %arg7: memref<1x1x32xf32, #tpu.memory_space<vmem>>, %arg8: memref<1x1x32xf32, #tpu.memory_space<vmem>>, %arg9: memref<1x1x32xf32, #tpu.memory_space<vmem>>, %arg10: memref<1x32x128xbf16, #tpu.memory_space<vmem>>, %arg11: memref<1x1x128xf32, #tpu.memory_space<vmem>>, %arg12: memref<1x128x32xbf16, #tpu.memory_space<vmem>>, %arg13: memref<1x1x32xf32, #tpu.memory_space<vmem>>, %arg14: memref<1x32xf32, #tpu.memory_space<vmem>>, %arg15: memref<1x32xf32, #tpu.memory_space<vmem>>, %arg16: memref<32x128xbf16, #tpu.memory_space<vmem>>, %arg17: memref<1x128xf32, #tpu.memory_space<vmem>>, %arg18: memref<1x3x128xf32, #tpu.memory_space<vmem>>, %arg19: memref<8x32xf32, #tpu.memory_space<vmem>>, %arg20: memref<8x32xf32, #tpu.memory_space<vmem>>) attributes {dimension_semantics = [#tpu.dimension_semantics<parallel>, #tpu.dimension_semantics<arbitrary>], iteration_bounds = array<i64: 2, 2>, scalar_prefetch = 0 : i64, scratch_operands = 2 : i64, tpu.core_type = #tpu.core_type<tc>, window_params = [{transform_indices = @transform_0, window_bounds = array<i64: 1, 8, 32>}, {transform_indices = @transform_1, window_bounds = array<i64: 1, 1, 32>}, {transform_indices = @transform_2, window_bounds = array<i64: 1, 1, 32>}, {transform_indices = @transform_3, window_bounds = array<i64: 1, 32, 96>}, {transform_indices = @transform_4, window_bounds = array<i64: 1, 32, 32>}, {transform_indices = @transform_5, window_bounds = array<i64: 1, 1, 32>}, {transform_indices = @transform_6, window_bounds = array<i64: 1, 1, 32>}, {transform_indices = @transform_7, window_bounds = array<i64: 1, 1, 32>}, {transform_indices = @transform_8, window_bounds = array<i64: 1, 32, 128>}, {transform_indices = @transform_9, window_bounds = array<i64: 1, 1, 128>}, {transform_indices = @transform_10, window_bounds = array<i64: 1, 128, 32>}, {transform_indices = @transform_11, window_bounds = array<i64: 1, 1, 32>}, {pipeline_mode = #tpu.pipeline_mode<synchronous>, transform_indices = @transform_12, window_bounds = array<i64: 1, 32>}, {pipeline_mode = #tpu.pipeline_mode<synchronous>, transform_indices = @transform_13, window_bounds = array<i64: 1, 32>}, {pipeline_mode = #tpu.pipeline_mode<synchronous>, transform_indices = @transform_14, window_bounds = array<i64: 32, 128>}, {pipeline_mode = #tpu.pipeline_mode<synchronous>, transform_indices = @transform_15, window_bounds = array<i64: 1, 128>}, {transform_indices = @transform_16, window_bounds = array<i64: 1, 3, 128>}]} {
    %c0_i32 = arith.constant 0 : i32
    %0 = arith.cmpi eq, %arg1, %c0_i32 : i32
    %1 = arith.extui %0 : i1 to i32
    %c0_i32_0 = arith.constant 0 : i32
    %2 = arith.cmpi ne, %1, %c0_i32_0 : i32
    scf.if %2 {
      %c0_93 = arith.constant 0 : index
      %c0_94 = arith.constant 0 : index
      %c0_95 = arith.constant 0 : index
      %215 = vector.load %arg2[%c0_93, %c0_94, %c0_95] : memref<1x8x32xf32, #tpu.memory_space<vmem>>, vector<1x8x32xf32>
      %216 = vector.shape_cast %215 : vector<1x8x32xf32> to vector<8x32xf32>
      %c0_96 = arith.constant 0 : index
      %c0_97 = arith.constant 0 : index
      %217 = vector.load %arg19[%c0_96, %c0_97] : memref<8x32xf32, #tpu.memory_space<vmem>>, vector<8x32xf32>
      tpu.vector_store %arg19[%c0_96, %c0_97], %216 {strides = array<i32>} : memref<8x32xf32, #tpu.memory_space<vmem>>, vector<8x32xf32>,
    } else {
    }
    %c0 = arith.constant 0 : index
    %c0_1 = arith.constant 0 : index
    %3 = vector.load %arg19[%c0, %c0_1] : memref<8x32xf32, #tpu.memory_space<vmem>>, vector<8x32xf32>
    %c0_2 = arith.constant 0 : index
    %c0_3 = arith.constant 0 : index
    %c0_4 = arith.constant 0 : index
    %4 = vector.load %arg3[%c0_2, %c0_3, %c0_4] : memref<1x1x32xf32, #tpu.memory_space<vmem>>, vector<1x1x32xf32>
    %5 = vector.shape_cast %4 : vector<1x1x32xf32> to vector<1x32xf32>
    %c0_5 = arith.constant 0 : index
    %c0_6 = arith.constant 0 : index
    %c0_7 = arith.constant 0 : index
    %6 = vector.load %arg4[%c0_5, %c0_6, %c0_7] : memref<1x1x32xf32, #tpu.memory_space<vmem>>, vector<1x1x32xf32>
    %7 = vector.shape_cast %6 : vector<1x1x32xf32> to vector<1x32xf32>
    %cst = arith.constant dense<0.000000e+00> : vector<8xf32>
    %8 = vector.multi_reduction <add>, %3, %cst [1] : vector<8x32xf32> to vector<8xf32>
    %9 = vector.shape_cast %8 : vector<8xf32> to vector<8x1xf32>
    %cst_8 = arith.constant 3.200000e+01 : f32
    %10 = vector.broadcast %cst_8 : f32 to vector<8x1xf32>
    %11 = arith.divf %9, %10 : vector<8x1xf32>
    %12 = vector.broadcast %11 : vector<8x1xf32> to vector<8x32xf32>
    %13 = arith.subf %3, %12 : vector<8x32xf32>
    %14 = arith.mulf %13, %13 : vector<8x32xf32>
    %cst_9 = arith.constant dense<0.000000e+00> : vector<8xf32>
    %15 = vector.multi_reduction <add>, %14, %cst_9 [1] : vector<8x32xf32> to vector<8xf32>
    %16 = vector.shape_cast %15 : vector<8xf32> to vector<8x1xf32>
    %cst_10 = arith.constant 3.200000e+01 : f32
    %17 = vector.broadcast %cst_10 : f32 to vector<8x1xf32>
    %18 = arith.divf %16, %17 : vector<8x1xf32>
    %cst_11 = arith.constant 9.99999974E-6 : f32
    %19 = vector.broadcast %cst_11 : f32 to vector<8x1xf32>
    %20 = arith.addf %18, %19 : vector<8x1xf32>
    %21 = math.rsqrt %20 : vector<8x1xf32>
    %22 = vector.broadcast %21 : vector<8x1xf32> to vector<8x32xf32>
    %23 = arith.mulf %13, %22 : vector<8x32xf32>
    %24 = vector.broadcast %5 : vector<1x32xf32> to vector<8x32xf32>
    %25 = arith.mulf %23, %24 : vector<8x32xf32>
    %26 = vector.broadcast %7 : vector<1x32xf32> to vector<8x32xf32>
    %27 = arith.addf %25, %26 : vector<8x32xf32>
    %28 = arith.truncf %27 : vector<8x32xf32> to vector<8x32xbf16>
    %c0_12 = arith.constant 0 : index
    %c0_13 = arith.constant 0 : index
    %c0_14 = arith.constant 0 : index
    %29 = vector.load %arg5[%c0_12, %c0_13, %c0_14] : memref<1x32x96xbf16, #tpu.memory_space<vmem>>, vector<1x32x96xbf16>
    %30 = vector.shape_cast %29 : vector<1x32x96xbf16> to vector<32x96xbf16>
    %cst_15 = arith.constant dense<0.000000e+00> : vector<8x96xf32>
    %31 = tpu.matmul %28, %30, %cst_15 {dimension_numbers = #tpu.dot_dimension_numbers<[1], [0], [0], [1], [0, 0, 1, 1], [], []>} : vector<8x32xbf16>, vector<32x96xbf16>, vector<8x96xf32> -> vector<8x96xf32>
    %32 = vector.extract_strided_slice %31 {offsets = [0, 0], sizes = [8, 8], strides = [1, 1]} : vector<8x96xf32> to vector<8x8xf32>
    %cst_16 = arith.constant 0.353553385 : f32
    %33 = vector.broadcast %cst_16 : f32 to vector<8x8xf32>
    %34 = arith.mulf %32, %33 : vector<8x8xf32>
    %35 = arith.truncf %34 : vector<8x8xf32> to vector<8x8xbf16>
    %36 = vector.extract_strided_slice %31 {offsets = [0, 32], sizes = [8, 8], strides = [1, 1]} : vector<8x96xf32> to vector<8x8xf32>
    %37 = arith.truncf %36 : vector<8x8xf32> to vector<8x8xbf16>
    %38 = vector.extract_strided_slice %31 {offsets = [0, 64], sizes = [8, 8], strides = [1, 1]} : vector<8x96xf32> to vector<8x8xf32>
    %39 = arith.truncf %38 : vector<8x8xf32> to vector<8x8xbf16>
    %cst_17 = arith.constant dense<0.000000e+00> : vector<8x8xf32>
    %40 = tpu.matmul %35, %37, %cst_17 {dimension_numbers = #tpu.dot_dimension_numbers<[1], [1], [0], [0], [0, 0, 1, 0], [], []>} : vector<8x8xbf16>, vector<8x8xbf16>, vector<8x8xf32> -> vector<8x8xf32>
    %cst_18 = arith.constant dense<0xFF800000> : vector<8xf32>
    %41 = vector.multi_reduction <maximumf>, %40, %cst_18 [1] : vector<8x8xf32> to vector<8xf32>
    %42 = vector.shape_cast %41 : vector<8xf32> to vector<8x1xf32>
    %43 = vector.broadcast %42 : vector<8x1xf32> to vector<8x8xf32>
    %44 = arith.subf %40, %43 : vector<8x8xf32>
    %45 = math.exp %44 : vector<8x8xf32>
    %cst_19 = arith.constant dense<0.000000e+00> : vector<8xf32>
    %46 = vector.multi_reduction <add>, %45, %cst_19 [1] : vector<8x8xf32> to vector<8xf32>
    %47 = vector.shape_cast %46 : vector<8xf32> to vector<8x1xf32>
    %48 = tpu.reciprocal %47 {approx = true} : vector<8x1xf32> -> vector<8x1xf32>
    %49 = vector.broadcast %48 : vector<8x1xf32> to vector<8x8xf32>
    %50 = arith.mulf %45, %49 : vector<8x8xf32>
    %51 = arith.truncf %50 : vector<8x8xf32> to vector<8x8xbf16>
    %cst_20 = arith.constant dense<0.000000e+00> : vector<8x8xf32>
    %52 = tpu.matmul %51, %39, %cst_20 {dimension_numbers = #tpu.dot_dimension_numbers<[1], [0], [0], [1], [0, 0, 1, 1], [], []>} : vector<8x8xbf16>, vector<8x8xbf16>, vector<8x8xf32> -> vector<8x8xf32>
    %c0_21 = arith.constant 0 : index
    %c0_22 = arith.constant 0 : index
    %53 = vector.load %arg20[%c0_21, %c0_22] : memref<8x32xf32, #tpu.memory_space<vmem>>, vector<8x8xf32>
    tpu.vector_store %arg20[%c0_21, %c0_22], %52 {strides = array<i32>} : memref<8x32xf32, #tpu.memory_space<vmem>>, vector<8x8xf32>,
    %54 = vector.extract_strided_slice %31 {offsets = [0, 8], sizes = [8, 8], strides = [1, 1]} : vector<8x96xf32> to vector<8x8xf32>
    %cst_23 = arith.constant 0.353553385 : f32
    %55 = vector.broadcast %cst_23 : f32 to vector<8x8xf32>
    %56 = arith.mulf %54, %55 : vector<8x8xf32>
    %57 = arith.truncf %56 : vector<8x8xf32> to vector<8x8xbf16>
    %58 = vector.extract_strided_slice %31 {offsets = [0, 40], sizes = [8, 8], strides = [1, 1]} : vector<8x96xf32> to vector<8x8xf32>
    %59 = arith.truncf %58 : vector<8x8xf32> to vector<8x8xbf16>
    %60 = vector.extract_strided_slice %31 {offsets = [0, 72], sizes = [8, 8], strides = [1, 1]} : vector<8x96xf32> to vector<8x8xf32>
    %61 = arith.truncf %60 : vector<8x8xf32> to vector<8x8xbf16>
    %cst_24 = arith.constant dense<0.000000e+00> : vector<8x8xf32>
    %62 = tpu.matmul %57, %59, %cst_24 {dimension_numbers = #tpu.dot_dimension_numbers<[1], [1], [0], [0], [0, 0, 1, 0], [], []>} : vector<8x8xbf16>, vector<8x8xbf16>, vector<8x8xf32> -> vector<8x8xf32>
    %cst_25 = arith.constant dense<0xFF800000> : vector<8xf32>
    %63 = vector.multi_reduction <maximumf>, %62, %cst_25 [1] : vector<8x8xf32> to vector<8xf32>
    %64 = vector.shape_cast %63 : vector<8xf32> to vector<8x1xf32>
    %65 = vector.broadcast %64 : vector<8x1xf32> to vector<8x8xf32>
    %66 = arith.subf %62, %65 : vector<8x8xf32>
    %67 = math.exp %66 : vector<8x8xf32>
    %cst_26 = arith.constant dense<0.000000e+00> : vector<8xf32>
    %68 = vector.multi_reduction <add>, %67, %cst_26 [1] : vector<8x8xf32> to vector<8xf32>
    %69 = vector.shape_cast %68 : vector<8xf32> to vector<8x1xf32>
    %70 = tpu.reciprocal %69 {approx = true} : vector<8x1xf32> -> vector<8x1xf32>
    %71 = vector.broadcast %70 : vector<8x1xf32> to vector<8x8xf32>
    %72 = arith.mulf %67, %71 : vector<8x8xf32>
    %73 = arith.truncf %72 : vector<8x8xf32> to vector<8x8xbf16>
    %cst_27 = arith.constant dense<0.000000e+00> : vector<8x8xf32>
    %74 = tpu.matmul %73, %61, %cst_27 {dimension_numbers = #tpu.dot_dimension_numbers<[1], [0], [0], [1], [0, 0, 1, 1], [], []>} : vector<8x8xbf16>, vector<8x8xbf16>, vector<8x8xf32> -> vector<8x8xf32>
    %c0_28 = arith.constant 0 : index
    %c8 = arith.constant 8 : index
    %75 = vector.load %arg20[%c0_28, %c8] : memref<8x32xf32, #tpu.memory_space<vmem>>, vector<8x8xf32>
    tpu.vector_store %arg20[%c0_28, %c8], %74 {strides = array<i32>} : memref<8x32xf32, #tpu.memory_space<vmem>>, vector<8x8xf32>,
    %76 = vector.extract_strided_slice %31 {offsets = [0, 16], sizes = [8, 8], strides = [1, 1]} : vector<8x96xf32> to vector<8x8xf32>
    %cst_29 = arith.constant 0.353553385 : f32
    %77 = vector.broadcast %cst_29 : f32 to vector<8x8xf32>
    %78 = arith.mulf %76, %77 : vector<8x8xf32>
    %79 = arith.truncf %78 : vector<8x8xf32> to vector<8x8xbf16>
    %80 = vector.extract_strided_slice %31 {offsets = [0, 48], sizes = [8, 8], strides = [1, 1]} : vector<8x96xf32> to vector<8x8xf32>
    %81 = arith.truncf %80 : vector<8x8xf32> to vector<8x8xbf16>
    %82 = vector.extract_strided_slice %31 {offsets = [0, 80], sizes = [8, 8], strides = [1, 1]} : vector<8x96xf32> to vector<8x8xf32>
    %83 = arith.truncf %82 : vector<8x8xf32> to vector<8x8xbf16>
    %cst_30 = arith.constant dense<0.000000e+00> : vector<8x8xf32>
    %84 = tpu.matmul %79, %81, %cst_30 {dimension_numbers = #tpu.dot_dimension_numbers<[1], [1], [0], [0], [0, 0, 1, 0], [], []>} : vector<8x8xbf16>, vector<8x8xbf16>, vector<8x8xf32> -> vector<8x8xf32>
    %cst_31 = arith.constant dense<0xFF800000> : vector<8xf32>
    %85 = vector.multi_reduction <maximumf>, %84, %cst_31 [1] : vector<8x8xf32> to vector<8xf32>
    %86 = vector.shape_cast %85 : vector<8xf32> to vector<8x1xf32>
    %87 = vector.broadcast %86 : vector<8x1xf32> to vector<8x8xf32>
    %88 = arith.subf %84, %87 : vector<8x8xf32>
    %89 = math.exp %88 : vector<8x8xf32>
    %cst_32 = arith.constant dense<0.000000e+00> : vector<8xf32>
    %90 = vector.multi_reduction <add>, %89, %cst_32 [1] : vector<8x8xf32> to vector<8xf32>
    %91 = vector.shape_cast %90 : vector<8xf32> to vector<8x1xf32>
    %92 = tpu.reciprocal %91 {approx = true} : vector<8x1xf32> -> vector<8x1xf32>
    %93 = vector.broadcast %92 : vector<8x1xf32> to vector<8x8xf32>
    %94 = arith.mulf %89, %93 : vector<8x8xf32>
    %95 = arith.truncf %94 : vector<8x8xf32> to vector<8x8xbf16>
    %cst_33 = arith.constant dense<0.000000e+00> : vector<8x8xf32>
    %96 = tpu.matmul %95, %83, %cst_33 {dimension_numbers = #tpu.dot_dimension_numbers<[1], [0], [0], [1], [0, 0, 1, 1], [], []>} : vector<8x8xbf16>, vector<8x8xbf16>, vector<8x8xf32> -> vector<8x8xf32>
    %c0_34 = arith.constant 0 : index
    %c16 = arith.constant 16 : index
    %97 = vector.load %arg20[%c0_34, %c16] : memref<8x32xf32, #tpu.memory_space<vmem>>, vector<8x8xf32>
    tpu.vector_store %arg20[%c0_34, %c16], %96 {strides = array<i32>} : memref<8x32xf32, #tpu.memory_space<vmem>>, vector<8x8xf32>,
    %98 = vector.extract_strided_slice %31 {offsets = [0, 24], sizes = [8, 8], strides = [1, 1]} : vector<8x96xf32> to vector<8x8xf32>
    %cst_35 = arith.constant 0.353553385 : f32
    %99 = vector.broadcast %cst_35 : f32 to vector<8x8xf32>
    %100 = arith.mulf %98, %99 : vector<8x8xf32>
    %101 = arith.truncf %100 : vector<8x8xf32> to vector<8x8xbf16>
    %102 = vector.extract_strided_slice %31 {offsets = [0, 56], sizes = [8, 8], strides = [1, 1]} : vector<8x96xf32> to vector<8x8xf32>
    %103 = arith.truncf %102 : vector<8x8xf32> to vector<8x8xbf16>
    %104 = vector.extract_strided_slice %31 {offsets = [0, 88], sizes = [8, 8], strides = [1, 1]} : vector<8x96xf32> to vector<8x8xf32>
    %105 = arith.truncf %104 : vector<8x8xf32> to vector<8x8xbf16>
    %cst_36 = arith.constant dense<0.000000e+00> : vector<8x8xf32>
    %106 = tpu.matmul %101, %103, %cst_36 {dimension_numbers = #tpu.dot_dimension_numbers<[1], [1], [0], [0], [0, 0, 1, 0], [], []>} : vector<8x8xbf16>, vector<8x8xbf16>, vector<8x8xf32> -> vector<8x8xf32>
    %cst_37 = arith.constant dense<0xFF800000> : vector<8xf32>
    %107 = vector.multi_reduction <maximumf>, %106, %cst_37 [1] : vector<8x8xf32> to vector<8xf32>
    %108 = vector.shape_cast %107 : vector<8xf32> to vector<8x1xf32>
    %109 = vector.broadcast %108 : vector<8x1xf32> to vector<8x8xf32>
    %110 = arith.subf %106, %109 : vector<8x8xf32>
    %111 = math.exp %110 : vector<8x8xf32>
    %cst_38 = arith.constant dense<0.000000e+00> : vector<8xf32>
    %112 = vector.multi_reduction <add>, %111, %cst_38 [1] : vector<8x8xf32> to vector<8xf32>
    %113 = vector.shape_cast %112 : vector<8xf32> to vector<8x1xf32>
    %114 = tpu.reciprocal %113 {approx = true} : vector<8x1xf32> -> vector<8x1xf32>
    %115 = vector.broadcast %114 : vector<8x1xf32> to vector<8x8xf32>
    %116 = arith.mulf %111, %115 : vector<8x8xf32>
    %117 = arith.truncf %116 : vector<8x8xf32> to vector<8x8xbf16>
    %cst_39 = arith.constant dense<0.000000e+00> : vector<8x8xf32>
    %118 = tpu.matmul %117, %105, %cst_39 {dimension_numbers = #tpu.dot_dimension_numbers<[1], [0], [0], [1], [0, 0, 1, 1], [], []>} : vector<8x8xbf16>, vector<8x8xbf16>, vector<8x8xf32> -> vector<8x8xf32>
    %c0_40 = arith.constant 0 : index
    %c24 = arith.constant 24 : index
    %119 = vector.load %arg20[%c0_40, %c24] : memref<8x32xf32, #tpu.memory_space<vmem>>, vector<8x8xf32>
    tpu.vector_store %arg20[%c0_40, %c24], %118 {strides = array<i32>} : memref<8x32xf32, #tpu.memory_space<vmem>>, vector<8x8xf32>,
    %c0_41 = arith.constant 0 : index
    %c0_42 = arith.constant 0 : index
    %120 = vector.load %arg20[%c0_41, %c0_42] : memref<8x32xf32, #tpu.memory_space<vmem>>, vector<8x32xf32>
    %121 = arith.truncf %120 : vector<8x32xf32> to vector<8x32xbf16>
    %c0_43 = arith.constant 0 : index
    %c0_44 = arith.constant 0 : index
    %c0_45 = arith.constant 0 : index
    %122 = vector.load %arg6[%c0_43, %c0_44, %c0_45] : memref<1x32x32xbf16, #tpu.memory_space<vmem>>, vector<1x32x32xbf16>
    %123 = vector.shape_cast %122 : vector<1x32x32xbf16> to vector<32x32xbf16>
    %cst_46 = arith.constant dense<0.000000e+00> : vector<8x32xf32>
    %124 = tpu.matmul %121, %123, %cst_46 {dimension_numbers = #tpu.dot_dimension_numbers<[1], [0], [0], [1], [0, 0, 1, 1], [], []>} : vector<8x32xbf16>, vector<32x32xbf16>, vector<8x32xf32> -> vector<8x32xf32>
    %125 = arith.addf %3, %124 : vector<8x32xf32>
    %c0_47 = arith.constant 0 : index
    %c0_48 = arith.constant 0 : index
    %c0_49 = arith.constant 0 : index
    %126 = vector.load %arg7[%c0_47, %c0_48, %c0_49] : memref<1x1x32xf32, #tpu.memory_space<vmem>>, vector<1x1x32xf32>
    %127 = vector.shape_cast %126 : vector<1x1x32xf32> to vector<1x32xf32>
    %128 = vector.broadcast %127 : vector<1x32xf32> to vector<8x32xf32>
    %129 = arith.addf %125, %128 : vector<8x32xf32>
    %c0_50 = arith.constant 0 : index
    %c0_51 = arith.constant 0 : index
    %c0_52 = arith.constant 0 : index
    %130 = vector.load %arg8[%c0_50, %c0_51, %c0_52] : memref<1x1x32xf32, #tpu.memory_space<vmem>>, vector<1x1x32xf32>
    %131 = vector.shape_cast %130 : vector<1x1x32xf32> to vector<1x32xf32>
    %c0_53 = arith.constant 0 : index
    %c0_54 = arith.constant 0 : index
    %c0_55 = arith.constant 0 : index
    %132 = vector.load %arg9[%c0_53, %c0_54, %c0_55] : memref<1x1x32xf32, #tpu.memory_space<vmem>>, vector<1x1x32xf32>
    %133 = vector.shape_cast %132 : vector<1x1x32xf32> to vector<1x32xf32>
    %cst_56 = arith.constant dense<0.000000e+00> : vector<8xf32>
    %134 = vector.multi_reduction <add>, %129, %cst_56 [1] : vector<8x32xf32> to vector<8xf32>
    %135 = vector.shape_cast %134 : vector<8xf32> to vector<8x1xf32>
    %cst_57 = arith.constant 3.200000e+01 : f32
    %136 = vector.broadcast %cst_57 : f32 to vector<8x1xf32>
    %137 = arith.divf %135, %136 : vector<8x1xf32>
    %138 = vector.broadcast %137 : vector<8x1xf32> to vector<8x32xf32>
    %139 = arith.subf %129, %138 : vector<8x32xf32>
    %140 = arith.mulf %139, %139 : vector<8x32xf32>
    %cst_58 = arith.constant dense<0.000000e+00> : vector<8xf32>
    %141 = vector.multi_reduction <add>, %140, %cst_58 [1] : vector<8x32xf32> to vector<8xf32>
    %142 = vector.shape_cast %141 : vector<8xf32> to vector<8x1xf32>
    %cst_59 = arith.constant 3.200000e+01 : f32
    %143 = vector.broadcast %cst_59 : f32 to vector<8x1xf32>
    %144 = arith.divf %142, %143 : vector<8x1xf32>
    %cst_60 = arith.constant 9.99999974E-6 : f32
    %145 = vector.broadcast %cst_60 : f32 to vector<8x1xf32>
    %146 = arith.addf %144, %145 : vector<8x1xf32>
    %147 = math.rsqrt %146 : vector<8x1xf32>
    %148 = vector.broadcast %147 : vector<8x1xf32> to vector<8x32xf32>
    %149 = arith.mulf %139, %148 : vector<8x32xf32>
    %150 = vector.broadcast %131 : vector<1x32xf32> to vector<8x32xf32>
    %151 = arith.mulf %149, %150 : vector<8x32xf32>
    %152 = vector.broadcast %133 : vector<1x32xf32> to vector<8x32xf32>
    %153 = arith.addf %151, %152 : vector<8x32xf32>
    %154 = arith.truncf %153 : vector<8x32xf32> to vector<8x32xbf16>
    %c0_61 = arith.constant 0 : index
    %c0_62 = arith.constant 0 : index
    %c0_63 = arith.constant 0 : index
    %155 = vector.load %arg10[%c0_61, %c0_62, %c0_63] : memref<1x32x128xbf16, #tpu.memory_space<vmem>>, vector<1x32x128xbf16>
    %156 = vector.shape_cast %155 : vector<1x32x128xbf16> to vector<32x128xbf16>
    %cst_64 = arith.constant dense<0.000000e+00> : vector<8x128xf32>
    %157 = tpu.matmul %154, %156, %cst_64 {dimension_numbers = #tpu.dot_dimension_numbers<[1], [0], [0], [1], [0, 0, 1, 1], [], []>} : vector<8x32xbf16>, vector<32x128xbf16>, vector<8x128xf32> -> vector<8x128xf32>
    %c0_65 = arith.constant 0 : index
    %c0_66 = arith.constant 0 : index
    %c0_67 = arith.constant 0 : index
    %158 = vector.load %arg11[%c0_65, %c0_66, %c0_67] : memref<1x1x128xf32, #tpu.memory_space<vmem>>, vector<1x1x128xf32>
    %159 = vector.shape_cast %158 : vector<1x1x128xf32> to vector<1x128xf32>
    %160 = vector.broadcast %159 : vector<1x128xf32> to vector<8x128xf32>
    %161 = arith.addf %157, %160 : vector<8x128xf32>
    %cst_68 = arith.constant 5.000000e-01 : f32
    %162 = vector.broadcast %cst_68 : f32 to vector<8x128xf32>
    %163 = arith.mulf %162, %161 : vector<8x128xf32>
    %cst_69 = arith.constant 0.707106769 : f32
    %164 = vector.broadcast %cst_69 : f32 to vector<8x128xf32>
    %165 = arith.mulf %161, %164 : vector<8x128xf32>
    %cst_70 = arith.constant 0.000000e+00 : f32
    %166 = vector.broadcast %cst_70 : f32 to vector<8x128xf32>
    %167 = arith.cmpf oge, %165, %166 : vector<8x128xf32>
    %cst_71 = arith.constant 1.000000e+00 : f32
    %cst_72 = arith.constant -1.000000e+00 : f32
    %168 = vector.broadcast %cst_71 : f32 to vector<8x128xf32>
    %169 = vector.broadcast %cst_72 : f32 to vector<8x128xf32>
    %170 = arith.select %167, %168, %169 : vector<8x128xi1>, vector<8x128xf32>
    %171 = math.absf %165 : vector<8x128xf32>
    %cst_73 = arith.constant 0.327591091 : f32
    %172 = vector.broadcast %cst_73 : f32 to vector<8x128xf32>
    %173 = arith.mulf %172, %171 : vector<8x128xf32>
    %cst_74 = arith.constant 1.000000e+00 : f32
    %174 = vector.broadcast %cst_74 : f32 to vector<8x128xf32>
    %175 = arith.addf %174, %173 : vector<8x128xf32>
    %176 = tpu.reciprocal %175 {approx = true} : vector<8x128xf32> -> vector<8x128xf32>
    %cst_75 = arith.constant 1.06140542 : f32
    %177 = vector.broadcast %cst_75 : f32 to vector<8x128xf32>
    %178 = arith.mulf %177, %176 : vector<8x128xf32>
    %cst_76 = arith.constant -1.45315206 : f32
    %179 = vector.broadcast %cst_76 : f32 to vector<8x128xf32>
    %180 = arith.addf %178, %179 : vector<8x128xf32>
    %181 = arith.mulf %180, %176 : vector<8x128xf32>
    %cst_77 = arith.constant 1.42141378 : f32
    %182 = vector.broadcast %cst_77 : f32 to vector<8x128xf32>
    %183 = arith.addf %181, %182 : vector<8x128xf32>
    %184 = arith.mulf %183, %176 : vector<8x128xf32>
    %cst_78 = arith.constant -0.284496725 : f32
    %185 = vector.broadcast %cst_78 : f32 to vector<8x128xf32>
    %186 = arith.addf %184, %185 : vector<8x128xf32>
    %187 = arith.mulf %186, %176 : vector<8x128xf32>
    %cst_79 = arith.constant 0.254829586 : f32
    %188 = vector.broadcast %cst_79 : f32 to vector<8x128xf32>
    %189 = arith.addf %187, %188 : vector<8x128xf32>
    %190 = arith.mulf %189, %176 : vector<8x128xf32>
    %cst_80 = arith.constant 0.000000e+00 : f32
    %191 = vector.broadcast %cst_80 : f32 to vector<8x128xf32>
    %192 = arith.subf %191, %171 : vector<8x128xf32>
    %193 = arith.mulf %192, %171 : vector<8x128xf32>
    %194 = math.exp %193 : vector<8x128xf32>
    %195 = arith.mulf %190, %194 : vector<8x128xf32>
    %cst_81 = arith.constant 1.000000e+00 : f32
    %196 = vector.broadcast %cst_81 : f32 to vector<8x128xf32>
    %197 = arith.subf %196, %195 : vector<8x128xf32>
    %198 = arith.mulf %170, %197 : vector<8x128xf32>
    %cst_82 = arith.constant 1.000000e+00 : f32
    %199 = vector.broadcast %cst_82 : f32 to vector<8x128xf32>
    %200 = arith.addf %199, %198 : vector<8x128xf32>
    %201 = arith.mulf %163, %200 : vector<8x128xf32>
    %202 = arith.truncf %201 : vector<8x128xf32> to vector<8x128xbf16>
    %c0_83 = arith.constant 0 : index
    %c0_84 = arith.constant 0 : index
    %c0_85 = arith.constant 0 : index
    %203 = vector.load %arg12[%c0_83, %c0_84, %c0_85] : memref<1x128x32xbf16, #tpu.memory_space<vmem>>, vector<1x128x32xbf16>
    %204 = vector.shape_cast %203 : vector<1x128x32xbf16> to vector<128x32xbf16>
    %cst_86 = arith.constant dense<0.000000e+00> : vector<8x32xf32>
    %205 = tpu.matmul %202, %204, %cst_86 {dimension_numbers = #tpu.dot_dimension_numbers<[1], [0], [0], [1], [0, 0, 1, 1], [], []>} : vector<8x128xbf16>, vector<128x32xbf16>, vector<8x32xf32> -> vector<8x32xf32>
    %c0_87 = arith.constant 0 : index
    %c0_88 = arith.constant 0 : index
    %c0_89 = arith.constant 0 : index
    %206 = vector.load %arg13[%c0_87, %c0_88, %c0_89] : memref<1x1x32xf32, #tpu.memory_space<vmem>>, vector<1x1x32xf32>
    %207 = vector.shape_cast %206 : vector<1x1x32xf32> to vector<1x32xf32>
    %208 = vector.broadcast %207 : vector<1x32xf32> to vector<8x32xf32>
    %209 = arith.addf %205, %208 : vector<8x32xf32>
    %210 = arith.addf %129, %209 : vector<8x32xf32>
    %c0_90 = arith.constant 0 : index
    %c0_91 = arith.constant 0 : index
    %211 = vector.load %arg19[%c0_90, %c0_91] : memref<8x32xf32, #tpu.memory_space<vmem>>, vector<8x32xf32>
    tpu.vector_store %arg19[%c0_90, %c0_91], %210 {strides = array<i32>} : memref<8x32xf32, #tpu.memory_space<vmem>>, vector<8x32xf32>,
    %c1_i32 = arith.constant 1 : i32
    %212 = arith.cmpi eq, %arg1, %c1_i32 : i32
    %213 = arith.extui %212 : i1 to i32
    %c0_i32_92 = arith.constant 0 : i32
    %214 = arith.cmpi ne, %213, %c0_i32_92 : i32
    scf.if %214 {
      %215 = vector.extract_strided_slice %210 {offsets = [5, 0], sizes = [3, 32], strides = [1, 1]} : vector<8x32xf32> to vector<3x32xf32>
      %c0_93 = arith.constant 0 : index
      %c0_94 = arith.constant 0 : index
      %216 = vector.load %arg14[%c0_93, %c0_94] : memref<1x32xf32, #tpu.memory_space<vmem>>, vector<1x32xf32>
      %c0_95 = arith.constant 0 : index
      %c0_96 = arith.constant 0 : index
      %217 = vector.load %arg15[%c0_95, %c0_96] : memref<1x32xf32, #tpu.memory_space<vmem>>, vector<1x32xf32>
      %cst_97 = arith.constant dense<0.000000e+00> : vector<3xf32>
      %218 = vector.multi_reduction <add>, %215, %cst_97 [1] : vector<3x32xf32> to vector<3xf32>
      %219 = vector.shape_cast %218 : vector<3xf32> to vector<3x1xf32>
      %cst_98 = arith.constant 3.200000e+01 : f32
      %220 = vector.broadcast %cst_98 : f32 to vector<3x1xf32>
      %221 = arith.divf %219, %220 : vector<3x1xf32>
      %222 = vector.broadcast %221 : vector<3x1xf32> to vector<3x32xf32>
      %223 = arith.subf %215, %222 : vector<3x32xf32>
      %224 = arith.mulf %223, %223 : vector<3x32xf32>
      %cst_99 = arith.constant dense<0.000000e+00> : vector<3xf32>
      %225 = vector.multi_reduction <add>, %224, %cst_99 [1] : vector<3x32xf32> to vector<3xf32>
      %226 = vector.shape_cast %225 : vector<3xf32> to vector<3x1xf32>
      %cst_100 = arith.constant 3.200000e+01 : f32
      %227 = vector.broadcast %cst_100 : f32 to vector<3x1xf32>
      %228 = arith.divf %226, %227 : vector<3x1xf32>
      %cst_101 = arith.constant 9.99999974E-6 : f32
      %229 = vector.broadcast %cst_101 : f32 to vector<3x1xf32>
      %230 = arith.addf %228, %229 : vector<3x1xf32>
      %231 = math.rsqrt %230 : vector<3x1xf32>
      %232 = vector.broadcast %231 : vector<3x1xf32> to vector<3x32xf32>
      %233 = arith.mulf %223, %232 : vector<3x32xf32>
      %234 = vector.broadcast %216 : vector<1x32xf32> to vector<3x32xf32>
      %235 = arith.mulf %233, %234 : vector<3x32xf32>
      %236 = vector.broadcast %217 : vector<1x32xf32> to vector<3x32xf32>
      %237 = arith.addf %235, %236 : vector<3x32xf32>
      %238 = arith.truncf %237 : vector<3x32xf32> to vector<3x32xbf16>
      %c0_102 = arith.constant 0 : index
      %c0_103 = arith.constant 0 : index
      %239 = vector.load %arg16[%c0_102, %c0_103] : memref<32x128xbf16, #tpu.memory_space<vmem>>, vector<32x128xbf16>
      %cst_104 = arith.constant dense<0.000000e+00> : vector<3x128xf32>
      %240 = tpu.matmul %238, %239, %cst_104 {dimension_numbers = #tpu.dot_dimension_numbers<[1], [0], [0], [1], [0, 0, 1, 1], [], []>} : vector<3x32xbf16>, vector<32x128xbf16>, vector<3x128xf32> -> vector<3x128xf32>
      %c0_105 = arith.constant 0 : index
      %c0_106 = arith.constant 0 : index
      %241 = vector.load %arg17[%c0_105, %c0_106] : memref<1x128xf32, #tpu.memory_space<vmem>>, vector<1x128xf32>
      %242 = vector.broadcast %241 : vector<1x128xf32> to vector<3x128xf32>
      %243 = arith.addf %240, %242 : vector<3x128xf32>
      %c0_107 = arith.constant 0 : index
      %c0_108 = arith.constant 0 : index
      %c0_109 = arith.constant 0 : index
      %244 = vector.load %arg18[%c0_107, %c0_108, %c0_109] : memref<1x3x128xf32, #tpu.memory_space<vmem>>, vector<1x3x128xf32>
      %245 = vector.shape_cast %244 : vector<1x3x128xf32> to vector<3x128xf32>
      %246 = vector.shape_cast %243 : vector<3x128xf32> to vector<1x3x128xf32>
      tpu.vector_store %arg18[%c0_107, %c0_108, %c0_109], %246 {strides = array<i32>} : memref<1x3x128xf32, #tpu.memory_space<vmem>>, vector<1x3x128xf32>,
    } else {
    }
    return
  }
  func.func @transform_0(%arg0: i32, %arg1: i32) -> (i32, i32, i32) {
    %c0_i32 = arith.constant 0 : i32
    %c0_i32_0 = arith.constant 0 : i32
    %c0_i32_1 = arith.constant 0 : i32
    return %arg0, %c0_i32, %c0_i32_0 : i32, i32, i32
  }
  func.func @transform_1(%arg0: i32, %arg1: i32) -> (i32, i32, i32) {
    %c0_i32 = arith.constant 0 : i32
    %c0_i32_0 = arith.constant 0 : i32
    %c0_i32_1 = arith.constant 0 : i32
    return %arg1, %c0_i32, %c0_i32_0 : i32, i32, i32
  }
  func.func @transform_2(%arg0: i32, %arg1: i32) -> (i32, i32, i32) {
    %c0_i32 = arith.constant 0 : i32
    %c0_i32_0 = arith.constant 0 : i32
    %c0_i32_1 = arith.constant 0 : i32
    return %arg1, %c0_i32, %c0_i32_0 : i32, i32, i32
  }
  func.func @transform_3(%arg0: i32, %arg1: i32) -> (i32, i32, i32) {
    %c0_i32 = arith.constant 0 : i32
    %c0_i32_0 = arith.constant 0 : i32
    %c0_i32_1 = arith.constant 0 : i32
    return %arg1, %c0_i32, %c0_i32_0 : i32, i32, i32
  }
  func.func @transform_4(%arg0: i32, %arg1: i32) -> (i32, i32, i32) {
    %c0_i32 = arith.constant 0 : i32
    %c0_i32_0 = arith.constant 0 : i32
    %c0_i32_1 = arith.constant 0 : i32
    return %arg1, %c0_i32, %c0_i32_0 : i32, i32, i32
  }
  func.func @transform_5(%arg0: i32, %arg1: i32) -> (i32, i32, i32) {
    %c0_i32 = arith.constant 0 : i32
    %c0_i32_0 = arith.constant 0 : i32
    %c0_i32_1 = arith.constant 0 : i32
    return %arg1, %c0_i32, %c0_i32_0 : i32, i32, i32
  }
  func.func @transform_6(%arg0: i32, %arg1: i32) -> (i32, i32, i32) {
    %c0_i32 = arith.constant 0 : i32
    %c0_i32_0 = arith.constant 0 : i32
    %c0_i32_1 = arith.constant 0 : i32
    return %arg1, %c0_i32, %c0_i32_0 : i32, i32, i32
  }
  func.func @transform_7(%arg0: i32, %arg1: i32) -> (i32, i32, i32) {
    %c0_i32 = arith.constant 0 : i32
    %c0_i32_0 = arith.constant 0 : i32
    %c0_i32_1 = arith.constant 0 : i32
    return %arg1, %c0_i32, %c0_i32_0 : i32, i32, i32
  }
  func.func @transform_8(%arg0: i32, %arg1: i32) -> (i32, i32, i32) {
    %c0_i32 = arith.constant 0 : i32
    %c0_i32_0 = arith.constant 0 : i32
    %c0_i32_1 = arith.constant 0 : i32
    return %arg1, %c0_i32, %c0_i32_0 : i32, i32, i32
  }
  func.func @transform_9(%arg0: i32, %arg1: i32) -> (i32, i32, i32) {
    %c0_i32 = arith.constant 0 : i32
    %c0_i32_0 = arith.constant 0 : i32
    %c0_i32_1 = arith.constant 0 : i32
    return %arg1, %c0_i32, %c0_i32_0 : i32, i32, i32
  }
  func.func @transform_10(%arg0: i32, %arg1: i32) -> (i32, i32, i32) {
    %c0_i32 = arith.constant 0 : i32
    %c0_i32_0 = arith.constant 0 : i32
    %c0_i32_1 = arith.constant 0 : i32
    return %arg1, %c0_i32, %c0_i32_0 : i32, i32, i32
  }
  func.func @transform_11(%arg0: i32, %arg1: i32) -> (i32, i32, i32) {
    %c0_i32 = arith.constant 0 : i32
    %c0_i32_0 = arith.constant 0 : i32
    %c0_i32_1 = arith.constant 0 : i32
    return %arg1, %c0_i32, %c0_i32_0 : i32, i32, i32
  }
  func.func @transform_12(%arg0: i32, %arg1: i32) -> (i32, i32) {
    %c0_i32 = arith.constant 0 : i32
    %c0_i32_0 = arith.constant 0 : i32
    %c0_i32_1 = arith.constant 0 : i32
    return %c0_i32, %c0_i32_0 : i32, i32
  }
  func.func @transform_13(%arg0: i32, %arg1: i32) -> (i32, i32) {
    %c0_i32 = arith.constant 0 : i32
    %c0_i32_0 = arith.constant 0 : i32
    %c0_i32_1 = arith.constant 0 : i32
    return %c0_i32, %c0_i32_0 : i32, i32
  }
  func.func @transform_14(%arg0: i32, %arg1: i32) -> (i32, i32) {
    %c0_i32 = arith.constant 0 : i32
    %c0_i32_0 = arith.constant 0 : i32
    %c0_i32_1 = arith.constant 0 : i32
    return %c0_i32, %c0_i32_0 : i32, i32
  }
  func.func @transform_15(%arg0: i32, %arg1: i32) -> (i32, i32) {
    %c0_i32 = arith.constant 0 : i32
    %c0_i32_0 = arith.constant 0 : i32
    %c0_i32_1 = arith.constant 0 : i32
    return %c0_i32, %c0_i32_0 : i32, i32
  }
  func.func @transform_16(%arg0: i32, %arg1: i32) -> (i32, i32, i32) {
    %c0_i32 = arith.constant 0 : i32
    %c0_i32_0 = arith.constant 0 : i32
    %c0_i32_1 = arith.constant 0 : i32
    return %arg0, %c0_i32, %c0_i32_0 : i32, i32, i32
  }
}

</mosaic_0001>

<llo_original>
// kernel: tpu_custom_call.1
$region0: #{tpu_custom_call.1}
  #allocation0 [shape = 'u32[]', space=smem, size = 0x4, offset = 0x4, fixed_abs, tag = 'smem constant byte address 0x4 - core index']
  #allocation1 [shape = 'u32[144,128]{1,0:T(1,128)}', space=vmem, size = 0x12000, scoped, tag = 'internal scratch']
  #allocation2 [shape = 'f32[8,32]{1,0:T(8,128)}', space=vmem, size = 0x1000, scoped, tag = 'scratch operand']
  #allocation3 [shape = 'f32[8,32]{1,0:T(8,128)}', space=vmem, size = 0x1000, scoped, tag = 'scratch operand']
  %s0 = inlined_call_operand.vmem [shape: f32[2,8,32], index: 0, kind: input, shape index: {}]
  %s1 = inlined_call_operand.vmem [shape: f32[2,1,32], index: 1, kind: input, shape index: {}]
  %s2 = inlined_call_operand.vmem [shape: f32[2,1,32], index: 2, kind: input, shape index: {}]
  %s3 = inlined_call_operand.vmem [shape: bf16[2,32,96], index: 3, kind: input, shape index: {}]
  %s4 = inlined_call_operand.vmem [shape: bf16[2,32,32], index: 4, kind: input, shape index: {}]
  %s5 = inlined_call_operand.vmem [shape: f32[2,1,32], index: 5, kind: input, shape index: {}]
  %s6 = inlined_call_operand.vmem [shape: f32[2,1,32], index: 6, kind: input, shape index: {}]
  %s7 = inlined_call_operand.vmem [shape: f32[2,1,32], index: 7, kind: input, shape index: {}]
  %s8 = inlined_call_operand.vmem [shape: bf16[2,32,128], index: 8, kind: input, shape index: {}]
  %s9 = inlined_call_operand.vmem [shape: f32[2,1,128], index: 9, kind: input, shape index: {}]
  %s10 = inlined_call_operand.vmem [shape: bf16[2,128,32], index: 10, kind: input, shape index: {}]
  %s11 = inlined_call_operand.vmem [shape: f32[2,1,32], index: 11, kind: input, shape index: {}]
  %s12 = inlined_call_operand.vmem [shape: f32[1,32], index: 12, kind: input, shape index: {}]
  %s13 = inlined_call_operand.vmem [shape: f32[1,32], index: 13, kind: input, shape index: {}]
  %s14 = inlined_call_operand.vmem [shape: bf16[32,128], index: 14, kind: input, shape index: {}]
  %s15 = inlined_call_operand.vmem [shape: f32[1,128], index: 15, kind: input, shape index: {}]
  %s16 = inlined_call_operand.vmem [shape: f32[2,3,128], index: 16, kind: output, shape index: {}]
  %s17 = sld [smem:[#allocation0]]
  $region105: #{tpu_custom_call.1} parent=0
    _
  %s19 = ssub.s32 1, %s17
  %s20 = scalar_select 0, %s19, %s17
  loop: start=0, step=1, limit=6
  $region2: #{tpu_custom_call.1} parent=0 // loop_pre_header
    _
  $region3: #{tpu_custom_call.1} parent=0 // loop_header
    %s22 = sphi 0, %s26
    %p23 = scmp.ge.s32.totalorder %s22, 6
    %s29 = sphi 0, %s41
    %s30 = sphi 0, %s37
    %s31 = sphi 0, %s29
    %s32 = sphi 0, %s30
    %s33 = sphi 0, %s31
    %s34 = sphi 0, %s32
    %s44 = sphi 0, %s46
    %s47 = sphi 0, %s44
    %s48 = sphi 0, %s47
    %s64 = sphi 0, %s48
    %s70 = sphi 0, %s72
    %s73 = sphi 0, %s70
    %s74 = sphi 0, %s73
    %s90 = sphi 0, %s74
    %s96 = sphi 0, %s98
    %s99 = sphi 0, %s96
    %s100 = sphi 0, %s99
    %s116 = sphi 0, %s100
    %s122 = sphi 0, %s124
    %s125 = sphi 0, %s122
    %s126 = sphi 0, %s125
    %s142 = sphi 0, %s126
    %s148 = sphi 0, %s150
    %s151 = sphi 0, %s148
    %s152 = sphi 0, %s151
    %s168 = sphi 0, %s152
    %s174 = sphi 0, %s176
    %s177 = sphi 0, %s174
    %s178 = sphi 0, %s177
    %s194 = sphi 0, %s178
    %s200 = sphi 0, %s202
    %s203 = sphi 0, %s200
    %s204 = sphi 0, %s203
    %s220 = sphi 0, %s204
    %s226 = sphi 0, %s228
    %s229 = sphi 0, %s226
    %s230 = sphi 0, %s229
    %s246 = sphi 0, %s230
    %s252 = sphi 0, %s254
    %s255 = sphi 0, %s252
    %s256 = sphi 0, %s255
    %s272 = sphi 0, %s256
    %s278 = sphi 0, %s280
    %s281 = sphi 0, %s278
    %s282 = sphi 0, %s281
    %s298 = sphi 0, %s282
    %s304 = sphi 0, %s306
    %s307 = sphi 0, %s304
    %s308 = sphi 0, %s307
    %s324 = sphi 0, %s308
    %s330 = sphi 0, %s332
    %s333 = sphi 0, %s330
    %s334 = sphi 0, %s333
    %s350 = sphi 0, %s334
    %s354 = sphi 0, %s354
    %s356 = sphi 0, %s354
    %s357 = sphi 0, %s356
    %s371 = sphi 0, %s357
    %s375 = sphi 0, %s375
    %s377 = sphi 0, %s375
    %s378 = sphi 0, %s377
    %s392 = sphi 0, %s378
    %s396 = sphi 0, %s396
    %s398 = sphi 0, %s396
    %s399 = sphi 0, %s398
    %s413 = sphi 0, %s399
    %s417 = sphi 0, %s417
    %s419 = sphi 0, %s417
    %s420 = sphi 0, %s419
    %s434 = sphi 0, %s420
    %s440 = sphi 0, %s442
    %s443 = sphi 0, %s440
    %s444 = sphi 0, %s443
    %s460 = sphi 0, %s444
  $region4: #{tpu_custom_call.1} parent=0 // loop_header_branch
    %25 = sbr.rel (%p23) target = $region8
  $region5: #{tpu_custom_call.1} parent=0 // loop_body
    %s27 = ssub.s32 %s22, 1
    %s28 = ssub.s32 %s22, 2
    %s35 = sadd.s32 1, %s30
    %p36 = scmp.ge.s32.totalorder %s35, 2
    %s37 = scalar_select %p36, 0, %s35
    %s38 = sadd.s32 1, %s29
    %s39 = scalar_select %p36, %s38, %s29
    %p40 = scmp.ge.s32.totalorder %s39, 2
    %s41 = scalar_select %p40, 0, %s39
    %s42 = ssub.s32 %s29, %s41
    %p43 = scmp.eq.s32.totalorder %s42, 0
    %s45 = sadd.s32 %s44, 1
    %s46 = scalar_select %p43, %s44, %s45
    %p49 = pneg %p43
    %p50 = scmp.eq.s32.totalorder %s22, 3
    %p51 = por %p49, %p50
    %p52 = scmp.ne.s32.totalorder %s44, %s47
    %p53 = scmp.eq.s32.totalorder %s22, 0
    %p54 = por %p52, %p53
    %p55 = scmp.ne.s32.totalorder %s44, %s47
    %p56 = scmp.eq.s32.totalorder %s27, 3
    %p57 = por %p55, %p56
    %p58 = scmp.ne.s32.totalorder %s47, %s48
    %p59 = scmp.eq.s32.totalorder %s27, 0
    %p60 = por %p58, %p59
    %p61 = scmp.ne.s32.totalorder %s47, %s48
    %p62 = scmp.eq.s32.totalorder %s28, 3
    %p63 = por %p61, %p62
    %p65 = scmp.ne.s32.totalorder %s48, %s64
    %p66 = scmp.eq.s32.totalorder %s28, 0
    %p67 = por %p65, %p66
    %s68 = ssub.s32 %s30, %s37
    %p69 = scmp.eq.s32.totalorder %s68, 0
    %s71 = sadd.s32 %s70, 1
    %s72 = scalar_select %p69, %s70, %s71
    %p75 = pneg %p69
    %p76 = scmp.eq.s32.totalorder %s22, 3
    %p77 = por %p75, %p76
    %p78 = scmp.ne.s32.totalorder %s70, %s73
    %p79 = scmp.eq.s32.totalorder %s22, 0
    %p80 = por %p78, %p79
    %p81 = scmp.ne.s32.totalorder %s70, %s73
    %p82 = scmp.eq.s32.totalorder %s27, 3
    %p83 = por %p81, %p82
    %p84 = scmp.ne.s32.totalorder %s73, %s74
    %p85 = scmp.eq.s32.totalorder %s27, 0
    %p86 = por %p84, %p85
    %p87 = scmp.ne.s32.totalorder %s73, %s74
    %p88 = scmp.eq.s32.totalorder %s28, 3
    %p89 = por %p87, %p88
    %p91 = scmp.ne.s32.totalorder %s74, %s90
    %p92 = scmp.eq.s32.totalorder %s28, 0
    %p93 = por %p91, %p92
    %s94 = ssub.s32 %s30, %s37
    %p95 = scmp.eq.s32.totalorder %s94, 0
    %s97 = sadd.s32 %s96, 1
    %s98 = scalar_select %p95, %s96, %s97
    %p101 = pneg %p95
    %p102 = scmp.eq.s32.totalorder %s22, 3
    %p103 = por %p101, %p102
    %p104 = scmp.ne.s32.totalorder %s96, %s99
    %p105 = scmp.eq.s32.totalorder %s22, 0
    %p106 = por %p104, %p105
    %p107 = scmp.ne.s32.totalorder %s96, %s99
    %p108 = scmp.eq.s32.totalorder %s27, 3
    %p109 = por %p107, %p108
    %p110 = scmp.ne.s32.totalorder %s99, %s100
    %p111 = scmp.eq.s32.totalorder %s27, 0
    %p112 = por %p110, %p111
    %p113 = scmp.ne.s32.totalorder %s99, %s100
    %p114 = scmp.eq.s32.totalorder %s28, 3
    %p115 = por %p113, %p114
    %p117 = scmp.ne.s32.totalorder %s100, %s116
    %p118 = scmp.eq.s32.totalorder %s28, 0
    %p119 = por %p117, %p118
    %s120 = ssub.s32 %s30, %s37
    %p121 = scmp.eq.s32.totalorder %s120, 0
    %s123 = sadd.s32 %s122, 1
    %s124 = scalar_select %p121, %s122, %s123
    %p127 = pneg %p121
    %p128 = scmp.eq.s32.totalorder %s22, 3
    %p129 = por %p127, %p128
    %p130 = scmp.ne.s32.totalorder %s122, %s125
    %p131 = scmp.eq.s32.totalorder %s22, 0
    %p132 = por %p130, %p131
    %p133 = scmp.ne.s32.totalorder %s122, %s125
    %p134 = scmp.eq.s32.totalorder %s27, 3
    %p135 = por %p133, %p134
    %p136 = scmp.ne.s32.totalorder %s125, %s126
    %p137 = scmp.eq.s32.totalorder %s27, 0
    %p138 = por %p136, %p137
    %p139 = scmp.ne.s32.totalorder %s125, %s126
    %p140 = scmp.eq.s32.totalorder %s28, 3
    %p141 = por %p139, %p140
    %p143 = scmp.ne.s32.totalorder %s126, %s142
    %p144 = scmp.eq.s32.totalorder %s28, 0
    %p145 = por %p143, %p144
    %s146 = ssub.s32 %s30, %s37
    %p147 = scmp.eq.s32.totalorder %s146, 0
    %s149 = sadd.s32 %s148, 1
    %s150 = scalar_select %p147, %s148, %s149
    %p153 = pneg %p147
    %p154 = scmp.eq.s32.totalorder %s22, 3
    %p155 = por %p153, %p154
    %p156 = scmp.ne.s32.totalorder %s148, %s151
    %p157 = scmp.eq.s32.totalorder %s22, 0
    %p158 = por %p156, %p157
    %p159 = scmp.ne.s32.totalorder %s148, %s151
    %p160 = scmp.eq.s32.totalorder %s27, 3
    %p161 = por %p159, %p160
    %p162 = scmp.ne.s32.totalorder %s151, %s152
    %p163 = scmp.eq.s32.totalorder %s27, 0
    %p164 = por %p162, %p163
    %p165 = scmp.ne.s32.totalorder %s151, %s152
    %p166 = scmp.eq.s32.totalorder %s28, 3
    %p167 = por %p165, %p166
    %p169 = scmp.ne.s32.totalorder %s152, %s168
    %p170 = scmp.eq.s32.totalorder %s28, 0
    %p171 = por %p169, %p170
    %s172 = ssub.s32 %s30, %s37
    %p173 = scmp.eq.s32.totalorder %s172, 0
    %s175 = sadd.s32 %s174, 1
    %s176 = scalar_select %p173, %s174, %s175
    %p179 = pneg %p173
    %p180 = scmp.eq.s32.totalorder %s22, 3
    %p181 = por %p179, %p180
    %p182 = scmp.ne.s32.totalorder %s174, %s177
    %p183 = scmp.eq.s32.totalorder %s22, 0
    %p184 = por %p182, %p183
    %p185 = scmp.ne.s32.totalorder %s174, %s177
    %p186 = scmp.eq.s32.totalorder %s27, 3
    %p187 = por %p185, %p186
    %p188 = scmp.ne.s32.totalorder %s177, %s178
    %p189 = scmp.eq.s32.totalorder %s27, 0
    %p190 = por %p188, %p189
    %p191 = scmp.ne.s32.totalorder %s177, %s178
    %p192 = scmp.eq.s32.totalorder %s28, 3
    %p193 = por %p191, %p192
    %p195 = scmp.ne.s32.totalorder %s178, %s194
    %p196 = scmp.eq.s32.totalorder %s28, 0
    %p197 = por %p195, %p196
    %s198 = ssub.s32 %s30, %s37
    %p199 = scmp.eq.s32.totalorder %s198, 0
    %s201 = sadd.s32 %s200, 1
    %s202 = scalar_select %p199, %s200, %s201
    %p205 = pneg %p199
    %p206 = scmp.eq.s32.totalorder %s22, 3
    %p207 = por %p205, %p206
    %p208 = scmp.ne.s32.totalorder %s200, %s203
    %p209 = scmp.eq.s32.totalorder %s22, 0
    %p210 = por %p208, %p209
    %p211 = scmp.ne.s32.totalorder %s200, %s203
    %p212 = scmp.eq.s32.totalorder %s27, 3
    %p213 = por %p211, %p212
    %p214 = scmp.ne.s32.totalorder %s203, %s204
    %p215 = scmp.eq.s32.totalorder %s27, 0
    %p216 = por %p214, %p215
    %p217 = scmp.ne.s32.totalorder %s203, %s204
    %p218 = scmp.eq.s32.totalorder %s28, 3
    %p219 = por %p217, %p218
    %p221 = scmp.ne.s32.totalorder %s204, %s220
    %p222 = scmp.eq.s32.totalorder %s28, 0
    %p223 = por %p221, %p222
    %s224 = ssub.s32 %s30, %s37
    %p225 = scmp.eq.s32.totalorder %s224, 0
    %s227 = sadd.s32 %s226, 1
    %s228 = scalar_select %p225, %s226, %s227
    %p231 = pneg %p225
    %p232 = scmp.eq.s32.totalorder %s22, 3
    %p233 = por %p231, %p232
    %p234 = scmp.ne.s32.totalorder %s226, %s229
    %p235 = scmp.eq.s32.totalorder %s22, 0
    %p236 = por %p234, %p235
    %p237 = scmp.ne.s32.totalorder %s226, %s229
    %p238 = scmp.eq.s32.totalorder %s27, 3
    %p239 = por %p237, %p238
    %p240 = scmp.ne.s32.totalorder %s229, %s230
    %p241 = scmp.eq.s32.totalorder %s27, 0
    %p242 = por %p240, %p241
    %p243 = scmp.ne.s32.totalorder %s229, %s230
    %p244 = scmp.eq.s32.totalorder %s28, 3
    %p245 = por %p243, %p244
    %p247 = scmp.ne.s32.totalorder %s230, %s246
    %p248 = scmp.eq.s32.totalorder %s28, 0
    %p249 = por %p247, %p248
    %s250 = ssub.s32 %s30, %s37
    %p251 = scmp.eq.s32.totalorder %s250, 0
    %s253 = sadd.s32 %s252, 1
    %s254 = scalar_select %p251, %s252, %s253
    %p257 = pneg %p251
    %p258 = scmp.eq.s32.totalorder %s22, 3
    %p259 = por %p257, %p258
    %p260 = scmp.ne.s32.totalorder %s252, %s255
    %p261 = scmp.eq.s32.totalorder %s22, 0
    %p262 = por %p260, %p261
    %p263 = scmp.ne.s32.totalorder %s252, %s255
    %p264 = scmp.eq.s32.totalorder %s27, 3
    %p265 = por %p263, %p264
    %p266 = scmp.ne.s32.totalorder %s255, %s256
    %p267 = scmp.eq.s32.totalorder %s27, 0
    %p268 = por %p266, %p267
    %p269 = scmp.ne.s32.totalorder %s255, %s256
    %p270 = scmp.eq.s32.totalorder %s28, 3
    %p271 = por %p269, %p270
    %p273 = scmp.ne.s32.totalorder %s256, %s272
    %p274 = scmp.eq.s32.totalorder %s28, 0
    %p275 = por %p273, %p274
    %s276 = ssub.s32 %s30, %s37
    %p277 = scmp.eq.s32.totalorder %s276, 0
    %s279 = sadd.s32 %s278, 1
    %s280 = scalar_select %p277, %s278, %s279
    %p283 = pneg %p277
    %p284 = scmp.eq.s32.totalorder %s22, 3
    %p285 = por %p283, %p284
    %p286 = scmp.ne.s32.totalorder %s278, %s281
    %p287 = scmp.eq.s32.totalorder %s22, 0
    %p288 = por %p286, %p287
    %p289 = scmp.ne.s32.totalorder %s278, %s281
    %p290 = scmp.eq.s32.totalorder %s27, 3
    %p291 = por %p289, %p290
    %p292 = scmp.ne.s32.totalorder %s281, %s282
    %p293 = scmp.eq.s32.totalorder %s27, 0
    %p294 = por %p292, %p293
    %p295 = scmp.ne.s32.totalorder %s281, %s282
    %p296 = scmp.eq.s32.totalorder %s28, 3
    %p297 = por %p295, %p296
    %p299 = scmp.ne.s32.totalorder %s282, %s298
    %p300 = scmp.eq.s32.totalorder %s28, 0
    %p301 = por %p299, %p300
    %s302 = ssub.s32 %s30, %s37
    %p303 = scmp.eq.s32.totalorder %s302, 0
    %s305 = sadd.s32 %s304, 1
    %s306 = scalar_select %p303, %s304, %s305
    %p309 = pneg %p303
    %p310 = scmp.eq.s32.totalorder %s22, 3
    %p311 = por %p309, %p310
    %p312 = scmp.ne.s32.totalorder %s304, %s307
    %p313 = scmp.eq.s32.totalorder %s22, 0
    %p314 = por %p312, %p313
    %p315 = scmp.ne.s32.totalorder %s304, %s307
    %p316 = scmp.eq.s32.totalorder %s27, 3
    %p317 = por %p315, %p316
    %p318 = scmp.ne.s32.totalorder %s307, %s308
    %p319 = scmp.eq.s32.totalorder %s27, 0
    %p320 = por %p318, %p319
    %p321 = scmp.ne.s32.totalorder %s307, %s308
    %p322 = scmp.eq.s32.totalorder %s28, 3
    %p323 = por %p321, %p322
    %p325 = scmp.ne.s32.totalorder %s308, %s324
    %p326 = scmp.eq.s32.totalorder %s28, 0
    %p327 = por %p325, %p326
    %s328 = ssub.s32 %s30, %s37
    %p329 = scmp.eq.s32.totalorder %s328, 0
    %s331 = sadd.s32 %s330, 1
    %s332 = scalar_select %p329, %s330, %s331
    %p335 = pneg %p329
    %p336 = scmp.eq.s32.totalorder %s22, 3
    %p337 = por %p335, %p336
    %p338 = scmp.ne.s32.totalorder %s330, %s333
    %p339 = scmp.eq.s32.totalorder %s22, 0
    %p340 = por %p338, %p339
    %p341 = scmp.ne.s32.totalorder %s330, %s333
    %p342 = scmp.eq.s32.totalorder %s27, 3
    %p343 = por %p341, %p342
    %p344 = scmp.ne.s32.totalorder %s333, %s334
    %p345 = scmp.eq.s32.totalorder %s27, 0
    %p346 = por %p344, %p345
    %p347 = scmp.ne.s32.totalorder %s333, %s334
    %p348 = scmp.eq.s32.totalorder %s28, 3
    %p349 = por %p347, %p348
    %p351 = scmp.ne.s32.totalorder %s334, %s350
    %p352 = scmp.eq.s32.totalorder %s28, 0
    %p353 = por %p351, %p352
    %s355 = sadd.s32 %s354, 1
    %p358 = scmp.eq.s32.totalorder %s22, 3
    %p359 = scmp.ne.s32.totalorder %s354, %s356
    %p360 = scmp.eq.s32.totalorder %s22, 0
    %p361 = por %p359, %p360
    %p362 = scmp.ne.s32.totalorder %s354, %s356
    %p363 = scmp.eq.s32.totalorder %s27, 3
    %p364 = por %p362, %p363
    %p365 = scmp.ne.s32.totalorder %s356, %s357
    %p366 = scmp.eq.s32.totalorder %s27, 0
    %p367 = por %p365, %p366
    %p368 = scmp.ne.s32.totalorder %s356, %s357
    %p369 = scmp.eq.s32.totalorder %s28, 3
    %p370 = por %p368, %p369
    %p372 = scmp.ne.s32.totalorder %s357, %s371
    %p373 = scmp.eq.s32.totalorder %s28, 0
    %p374 = por %p372, %p373
    %s376 = sadd.s32 %s375, 1
    %p379 = scmp.eq.s32.totalorder %s22, 3
    %p380 = scmp.ne.s32.totalorder %s375, %s377
    %p381 = scmp.eq.s32.totalorder %s22, 0
    %p382 = por %p380, %p381
    %p383 = scmp.ne.s32.totalorder %s375, %s377
    %p384 = scmp.eq.s32.totalorder %s27, 3
    %p385 = por %p383, %p384
    %p386 = scmp.ne.s32.totalorder %s377, %s378
    %p387 = scmp.eq.s32.totalorder %s27, 0
    %p388 = por %p386, %p387
    %p389 = scmp.ne.s32.totalorder %s377, %s378
    %p390 = scmp.eq.s32.totalorder %s28, 3
    %p391 = por %p389, %p390
    %p393 = scmp.ne.s32.totalorder %s378, %s392
    %p394 = scmp.eq.s32.totalorder %s28, 0
    %p395 = por %p393, %p394
    %s397 = sadd.s32 %s396, 1
    %p400 = scmp.eq.s32.totalorder %s22, 3
    %p401 = scmp.ne.s32.totalorder %s396, %s398
    %p402 = scmp.eq.s32.totalorder %s22, 0
    %p403 = por %p401, %p402
    %p404 = scmp.ne.s32.totalorder %s396, %s398
    %p405 = scmp.eq.s32.totalorder %s27, 3
    %p406 = por %p404, %p405
    %p407 = scmp.ne.s32.totalorder %s398, %s399
    %p408 = scmp.eq.s32.totalorder %s27, 0
    %p409 = por %p407, %p408
    %p410 = scmp.ne.s32.totalorder %s398, %s399
    %p411 = scmp.eq.s32.totalorder %s28, 3
    %p412 = por %p410, %p411
    %p414 = scmp.ne.s32.totalorder %s399, %s413
    %p415 = scmp.eq.s32.totalorder %s28, 0
    %p416 = por %p414, %p415
    %s418 = sadd.s32 %s417, 1
    %p421 = scmp.eq.s32.totalorder %s22, 3
    %p422 = scmp.ne.s32.totalorder %s417, %s419
    %p423 = scmp.eq.s32.totalorder %s22, 0
    %p424 = por %p422, %p423
    %p425 = scmp.ne.s32.totalorder %s417, %s419
    %p426 = scmp.eq.s32.totalorder %s27, 3
    %p427 = por %p425, %p426
    %p428 = scmp.ne.s32.totalorder %s419, %s420
    %p429 = scmp.eq.s32.totalorder %s27, 0
    %p430 = por %p428, %p429
    %p431 = scmp.ne.s32.totalorder %s419, %s420
    %p432 = scmp.eq.s32.totalorder %s28, 3
    %p433 = por %p431, %p432
    %p435 = scmp.ne.s32.totalorder %s420, %s434
    %p436 = scmp.eq.s32.totalorder %s28, 0
    %p437 = por %p435, %p436
    %s438 = ssub.s32 %s29, %s41
    %p439 = scmp.eq.s32.totalorder %s438, 0
    %s441 = sadd.s32 %s440, 1
    %s442 = scalar_select %p439, %s440, %s441
    %p445 = pneg %p439
    %p446 = scmp.eq.s32.totalorder %s22, 3
    %p447 = por %p445, %p446
    %p448 = scmp.ne.s32.totalorder %s440, %s443
    %p449 = scmp.eq.s32.totalorder %s22, 0
    %p450 = por %p448, %p449
    %p451 = scmp.ne.s32.totalorder %s440, %s443
    %p452 = scmp.eq.s32.totalorder %s27, 3
    %p453 = por %p451, %p452
    %p454 = scmp.ne.s32.totalorder %s443, %s444
    %p455 = scmp.eq.s32.totalorder %s27, 0
    %p456 = por %p454, %p455
    %p457 = scmp.ne.s32.totalorder %s443, %s444
    %p458 = scmp.eq.s32.totalorder %s28, 3
    %p459 = por %p457, %p458
    %p461 = scmp.ne.s32.totalorder %s444, %s460
    %p462 = scmp.eq.s32.totalorder %s28, 0
    %p463 = por %p461, %p462
    %p464 = scmp.le.s32.totalorder 1, %s22
    %p465 = scmp.lt.s32.totalorder %s22, 5
    %p466 = pnand %p464, %p465
    %p467 = pneg %p466
    // Predicated region
    $region9: #{tpu_custom_call.1} parent=5 // pred_check
      _
    $region10: #{tpu_custom_call.1} parent=5 // pred_check_branch
      %469 = sbr.rel (%p466) target = $region12
    $region11: #{tpu_custom_call.1} parent=5 // pred_region
      %s470 = ssub.s32 %s22, 1
      // Predicated region
      $region13: #{tpu_custom_call.1} parent=11 // pred_check
        %p471 = pneg %p367
      $region14: #{tpu_custom_call.1} parent=11 // pred_check_branch
        %473 = sbr.rel (%p471) target = $region16
      $region15: #{tpu_custom_call.1} parent=11 // pred_region
        _
      $region16: #{tpu_custom_call.1} parent=11 // pred_fallthru
        _
      // Predicated region
      $region17: #{tpu_custom_call.1} parent=11 // pred_check
        %p474 = pneg %p388
      $region18: #{tpu_custom_call.1} parent=11 // pred_check_branch
        %476 = sbr.rel (%p474) target = $region20
      $region19: #{tpu_custom_call.1} parent=11 // pred_region
        _
      $region20: #{tpu_custom_call.1} parent=11 // pred_fallthru
        _
      // Predicated region
      $region21: #{tpu_custom_call.1} parent=11 // pred_check
        %p477 = pneg %p409
      $region22: #{tpu_custom_call.1} parent=11 // pred_check_branch
        %479 = sbr.rel (%p477) target = $region24
      $region23: #{tpu_custom_call.1} parent=11 // pred_region
        _
      $region24: #{tpu_custom_call.1} parent=11 // pred_fallthru
        _
      // Predicated region
      $region25: #{tpu_custom_call.1} parent=11 // pred_check
        %p480 = pneg %p430
      $region26: #{tpu_custom_call.1} parent=11 // pred_check_branch
        %482 = sbr.rel (%p480) target = $region28
      $region27: #{tpu_custom_call.1} parent=11 // pred_region
        _
      $region28: #{tpu_custom_call.1} parent=11 // pred_fallthru
        _
    $region12: #{tpu_custom_call.1} parent=5 // pred_fallthru
      _
    %p483 = scmp.lt.s32.totalorder %s22, 4
    // Predicated region
    $region29: #{tpu_custom_call.1} parent=5 // pred_check
      %p484 = pneg %p483
    $region30: #{tpu_custom_call.1} parent=5 // pred_check_branch
      %486 = sbr.rel (%p484) target = $region32
    $region31: #{tpu_custom_call.1} parent=5 // pred_region
      // Predicated region
      $region33: #{tpu_custom_call.1} parent=31 // pred_check
        %p487 = pneg %p54
      $region34: #{tpu_custom_call.1} parent=31 // pred_check_branch
        %489 = sbr.rel (%p487) target = $region36
      $region35: #{tpu_custom_call.1} parent=31 // pred_region
        %p490 = scmp.lt.s32.totalorder %s29, 1
        %s491 = scalar_select %p490, %s29, 1
        %s492 = smul.addr %s491, 8
        %s493 = scalar_lea.vmem %s0, %s492
      $region36: #{tpu_custom_call.1} parent=31 // pred_fallthru
        _
      // Predicated region
      $region37: #{tpu_custom_call.1} parent=31 // pred_check
        %p494 = pneg %p80
      $region38: #{tpu_custom_call.1} parent=31 // pred_check_branch
        %496 = sbr.rel (%p494) target = $region40
      $region39: #{tpu_custom_call.1} parent=31 // pred_region
        %p497 = scmp.lt.s32.totalorder %s30, 1
        %s498 = scalar_select %p497, %s30, 1
        %s499 = scalar_lea.vmem %s1, %s498
      $region40: #{tpu_custom_call.1} parent=31 // pred_fallthru
        _
      // Predicated region
      $region41: #{tpu_custom_call.1} parent=31 // pred_check
        %p500 = pneg %p106
      $region42: #{tpu_custom_call.1} parent=31 // pred_check_branch
        %502 = sbr.rel (%p500) target = $region44
      $region43: #{tpu_custom_call.1} parent=31 // pred_region
        %p503 = scmp.lt.s32.totalorder %s30, 1
        %s504 = scalar_select %p503, %s30, 1
        %s505 = scalar_lea.vmem %s2, %s504
      $region44: #{tpu_custom_call.1} parent=31 // pred_fallthru
        _
      // Predicated region
      $region45: #{tpu_custom_call.1} parent=31 // pred_check
        %p506 = pneg %p132
      $region46: #{tpu_custom_call.1} parent=31 // pred_check_branch
        %508 = sbr.rel (%p506) target = $region48
      $region47: #{tpu_custom_call.1} parent=31 // pred_region
        %p509 = scmp.lt.s32.totalorder %s30, 1
        %s510 = scalar_select %p509, %s30, 1
        %s511 = smul.addr %s510, 4
        %s512 = smul.addr %s511, 4
        %s513 = scalar_lea.vmem %s3, %s512
      $region48: #{tpu_custom_call.1} parent=31 // pred_fallthru
        _
      // Predicated region
      $region49: #{tpu_custom_call.1} parent=31 // pred_check
        %p514 = pneg %p158
      $region50: #{tpu_custom_call.1} parent=31 // pred_check_branch
        %516 = sbr.rel (%p514) target = $region52
      $region51: #{tpu_custom_call.1} parent=31 // pred_region
        %p517 = scmp.lt.s32.totalorder %s30, 1
        %s518 = scalar_select %p517, %s30, 1
        %s519 = smul.addr %s518, 4
        %s520 = smul.addr %s519, 4
        %s521 = scalar_lea.vmem %s4, %s520
      $region52: #{tpu_custom_call.1} parent=31 // pred_fallthru
        _
      // Predicated region
      $region53: #{tpu_custom_call.1} parent=31 // pred_check
        %p522 = pneg %p184
      $region54: #{tpu_custom_call.1} parent=31 // pred_check_branch
        %524 = sbr.rel (%p522) target = $region56
      $region55: #{tpu_custom_call.1} parent=31 // pred_region
        %p525 = scmp.lt.s32.totalorder %s30, 1
        %s526 = scalar_select %p525, %s30, 1
        %s527 = scalar_lea.vmem %s5, %s526
      $region56: #{tpu_custom_call.1} parent=31 // pred_fallthru
        _
      // Predicated region
      $region57: #{tpu_custom_call.1} parent=31 // pred_check
        %p528 = pneg %p210
      $region58: #{tpu_custom_call.1} parent=31 // pred_check_branch
        %530 = sbr.rel (%p528) target = $region60
      $region59: #{tpu_custom_call.1} parent=31 // pred_region
        %p531 = scmp.lt.s32.totalorder %s30, 1
        %s532 = scalar_select %p531, %s30, 1
        %s533 = scalar_lea.vmem %s6, %s532
      $region60: #{tpu_custom_call.1} parent=31 // pred_fallthru
        _
      // Predicated region
      $region61: #{tpu_custom_call.1} parent=31 // pred_check
        %p534 = pneg %p236
      $region62: #{tpu_custom_call.1} parent=31 // pred_check_branch
        %536 = sbr.rel (%p534) target = $region64
      $region63: #{tpu_custom_call.1} parent=31 // pred_region
        %p537 = scmp.lt.s32.totalorder %s30, 1
        %s538 = scalar_select %p537, %s30, 1
        %s539 = scalar_lea.vmem %s7, %s538
      $region64: #{tpu_custom_call.1} parent=31 // pred_fallthru
        _
      // Predicated region
      $region65: #{tpu_custom_call.1} parent=31 // pred_check
        %p540 = pneg %p262
      $region66: #{tpu_custom_call.1} parent=31 // pred_check_branch
        %542 = sbr.rel (%p540) target = $region68
      $region67: #{tpu_custom_call.1} parent=31 // pred_region
        %p543 = scmp.lt.s32.totalorder %s30, 1
        %s544 = scalar_select %p543, %s30, 1
        %s545 = smul.addr %s544, 4
        %s546 = smul.addr %s545, 4
        %s547 = scalar_lea.vmem %s8, %s546
      $region68: #{tpu_custom_call.1} parent=31 // pred_fallthru
        _
      // Predicated region
      $region69: #{tpu_custom_call.1} parent=31 // pred_check
        %p548 = pneg %p288
      $region70: #{tpu_custom_call.1} parent=31 // pred_check_branch
        %550 = sbr.rel (%p548) target = $region72
      $region71: #{tpu_custom_call.1} parent=31 // pred_region
        %p551 = scmp.lt.s32.totalorder %s30, 1
        %s552 = scalar_select %p551, %s30, 1
        %s553 = scalar_lea.vmem %s9, %s552
      $region72: #{tpu_custom_call.1} parent=31 // pred_fallthru
        _
      // Predicated region
      $region73: #{tpu_custom_call.1} parent=31 // pred_check
        %p554 = pneg %p314
      $region74: #{tpu_custom_call.1} parent=31 // pred_check_branch
        %556 = sbr.rel (%p554) target = $region76
      $region75: #{tpu_custom_call.1} parent=31 // pred_region
        %p557 = scmp.lt.s32.totalorder %s30, 1
        %s558 = scalar_select %p557, %s30, 1
        %s559 = smul.addr %s558, 16
        %s560 = smul.addr %s559, 4
        %s561 = scalar_lea.vmem %s10, %s560
      $region76: #{tpu_custom_call.1} parent=31 // pred_fallthru
        _
      // Predicated region
      $region77: #{tpu_custom_call.1} parent=31 // pred_check
        %p562 = pneg %p340
      $region78: #{tpu_custom_call.1} parent=31 // pred_check_branch
        %564 = sbr.rel (%p562) target = $region80
      $region79: #{tpu_custom_call.1} parent=31 // pred_region
        %p565 = scmp.lt.s32.totalorder %s30, 1
        %s566 = scalar_select %p565, %s30, 1
        %s567 = scalar_lea.vmem %s11, %s566
      $region80: #{tpu_custom_call.1} parent=31 // pred_fallthru
        _
    $region32: #{tpu_custom_call.1} parent=5 // pred_fallthru
      _
    %p568 = scmp.le.s32.totalorder 1, %s22
    %p569 = scmp.lt.s32.totalorder %s22, 5
    %p570 = pnand %p568, %p569
    %p571 = pneg %p570
    // Predicated region
    $region81: #{tpu_custom_call.1} parent=5 // pred_check
      _
    $region82: #{tpu_custom_call.1} parent=5 // pred_check_branch
      %573 = sbr.rel (%p570) target = $region84
    $region83: #{tpu_custom_call.1} parent=5 // pred_region
      %s574 = ssub.s32 %s22, 1
      %p575 = scmp.lt.s32.totalorder %s31, 1
      %s576 = scalar_select %p575, %s31, 1
      %s577 = smul.addr %s576, 8
      %s578 = scalar_lea.vmem %s0, %s577
      %p579 = pneg %p60
      %p580 = pneg %p57
      %p581 = scmp.lt.s32.totalorder %s32, 1
      %s582 = scalar_select %p581, %s32, 1
      %s583 = scalar_lea.vmem %s1, %s582
      %p584 = pneg %p86
      %p585 = pneg %p83
      %p586 = scmp.lt.s32.totalorder %s32, 1
      %s587 = scalar_select %p586, %s32, 1
      %s588 = scalar_lea.vmem %s2, %s587
      %p589 = pneg %p112
      %p590 = pneg %p109
      %p591 = scmp.lt.s32.totalorder %s32, 1
      %s592 = scalar_select %p591, %s32, 1
      %s593 = smul.addr %s592, 4
      %s594 = smul.addr %s593, 4
      %s595 = scalar_lea.vmem %s3, %s594
      %p596 = pneg %p138
      %p597 = pneg %p135
      %p598 = scmp.lt.s32.totalorder %s32, 1
      %s599 = scalar_select %p598, %s32, 1
      %s600 = smul.addr %s599, 4
      %s601 = smul.addr %s600, 4
      %s602 = scalar_lea.vmem %s4, %s601
      %p603 = pneg %p164
      %p604 = pneg %p161
      %p605 = scmp.lt.s32.totalorder %s32, 1
      %s606 = scalar_select %p605, %s32, 1
      %s607 = scalar_lea.vmem %s5, %s606
      %p608 = pneg %p190
      %p609 = pneg %p187
      %p610 = scmp.lt.s32.totalorder %s32, 1
      %s611 = scalar_select %p610, %s32, 1
      %s612 = scalar_lea.vmem %s6, %s611
      %p613 = pneg %p216
      %p614 = pneg %p213
      %p615 = scmp.lt.s32.totalorder %s32, 1
      %s616 = scalar_select %p615, %s32, 1
      %s617 = scalar_lea.vmem %s7, %s616
      %p618 = pneg %p242
      %p619 = pneg %p239
      %p620 = scmp.lt.s32.totalorder %s32, 1
      %s621 = scalar_select %p620, %s32, 1
      %s622 = smul.addr %s621, 4
      %s623 = smul.addr %s622, 4
      %s624 = scalar_lea.vmem %s8, %s623
      %p625 = pneg %p268
      %p626 = pneg %p265
      %p627 = scmp.lt.s32.totalorder %s32, 1
      %s628 = scalar_select %p627, %s32, 1
      %s629 = scalar_lea.vmem %s9, %s628
      %p630 = pneg %p294
      %p631 = pneg %p291
      %p632 = scmp.lt.s32.totalorder %s32, 1
      %s633 = scalar_select %p632, %s32, 1
      %s634 = smul.addr %s633, 16
      %s635 = smul.addr %s634, 4
      %s636 = scalar_lea.vmem %s10, %s635
      %p637 = pneg %p320
      %p638 = pneg %p317
      %p639 = scmp.lt.s32.totalorder %s32, 1
      %s640 = scalar_select %p639, %s32, 1
      %s641 = scalar_lea.vmem %s11, %s640
      %p642 = pneg %p346
      %p643 = pneg %p343
      %p644 = pneg %p367
      %p645 = pneg %p364
      %p646 = pneg %p388
      %p647 = pneg %p385
      %p648 = pneg %p409
      %p649 = pneg %p406
      %p650 = pneg %p430
      %p651 = pneg %p427
      %p652 = pneg %p456
      %p653 = pneg %p453
      %p654 = scmp.lt.s32.totalorder %s31, 1
      %s655 = scalar_select %p654, %s31, 1
      %s656 = smul.addr %s655, 4
      %s657 = scalar_lea.vmem %s16, %s656
      %p658 = scmp.lt.s32.totalorder %s31, 1
      %s659 = scalar_select %p658, %s31, 1
      %s660 = smul.addr %s659, 8
      %s661 = scalar_lea.vmem %s0, %s660
      %p662 = scmp.lt.s32.totalorder %s32, 1
      %s663 = scalar_select %p662, %s32, 1
      %s664 = scalar_lea.vmem %s1, %s663
      %p665 = scmp.lt.s32.totalorder %s32, 1
      %s666 = scalar_select %p665, %s32, 1
      %s667 = scalar_lea.vmem %s2, %s666
      %p668 = scmp.lt.s32.totalorder %s32, 1
      %s669 = scalar_select %p668, %s32, 1
      %s670 = smul.addr %s669, 4
      %s671 = smul.addr %s670, 4
      %s672 = scalar_lea.vmem %s3, %s671
      %p673 = scmp.lt.s32.totalorder %s32, 1
      %s674 = scalar_select %p673, %s32, 1
      %s675 = smul.addr %s674, 4
      %s676 = smul.addr %s675, 4
      %s677 = scalar_lea.vmem %s4, %s676
      %p678 = scmp.lt.s32.totalorder %s32, 1
      %s679 = scalar_select %p678, %s32, 1
      %s680 = scalar_lea.vmem %s5, %s679
      %p681 = scmp.lt.s32.totalorder %s32, 1
      %s682 = scalar_select %p681, %s32, 1
      %s683 = scalar_lea.vmem %s6, %s682
      %p684 = scmp.lt.s32.totalorder %s32, 1
      %s685 = scalar_select %p684, %s32, 1
      %s686 = scalar_lea.vmem %s7, %s685
      %p687 = scmp.lt.s32.totalorder %s32, 1
      %s688 = scalar_select %p687, %s32, 1
      %s689 = smul.addr %s688, 4
      %s690 = smul.addr %s689, 4
      %s691 = scalar_lea.vmem %s8, %s690
      %p692 = scmp.lt.s32.totalorder %s32, 1
      %s693 = scalar_select %p692, %s32, 1
      %s694 = scalar_lea.vmem %s9, %s693
      %p695 = scmp.lt.s32.totalorder %s32, 1
      %s696 = scalar_select %p695, %s32, 1
      %s697 = smul.addr %s696, 16
      %s698 = smul.addr %s697, 4
      %s699 = scalar_lea.vmem %s10, %s698
      %p700 = scmp.lt.s32.totalorder %s32, 1
      %s701 = scalar_select %p700, %s32, 1
      %s702 = scalar_lea.vmem %s11, %s701
      %p703 = scmp.lt.s32.totalorder %s31, 1
      %s704 = scalar_select %p703, %s31, 1
      %s705 = smul.addr %s704, 4
      %s706 = scalar_lea.vmem %s16, %s705
      %p708 = scmp.eq.s32.totalorder %s32, 0
      // Predicated region
      $region85: #{tpu_custom_call.1} parent=83 // pred_check
        %p709 = pneg %p708
      $region86: #{tpu_custom_call.1} parent=83 // pred_check_branch
        %711 = sbr.rel (%p709) target = $region88
      $region87: #{tpu_custom_call.1} parent=83 // pred_region
        %v712 = vld [vmem:[%s661] sm:$0xff]
        %vm713 = vcmask 261120
        %714 = vst.msk [vmem:[#allocation2] sm:$0xff] %vm713, %v712
      $region88: #{tpu_custom_call.1} parent=83 // pred_fallthru
        _
      %v715 = vld [vmem:[#allocation2] sm:$0xff]
      %v716 = vld [vmem:[%s664] sm:$0x1]
      %v717 = vld [vmem:[%s667] sm:$0x1]
      %vm718 = vcmask 261120
      %v719 = vsel %vm718, %v715, 0.0
      %720 = vadd.xlane.f32.xlu0 %v719
      %v721 = vpop.xlane.xlu0 %720
      %v722 = vrcp.pop 32.0
      %v723 = vmul.f32 %v721, %v722
      %v724 = vsub.f32 %v715, %v723
      %v725 = vmul.f32 %v724, %v724
      %v726 = vsel %vm718, %v725, 0.0
      %727 = vadd.xlane.f32.xlu0 %v726
      %v728 = vpop.xlane.xlu0 %727
      %v729 = vmul.f32 %v728, %v722
      %v730 = vadd.f32 %v729, 1e-05
      %v731 = vrsqrt.pop %v730
      %v732 = vmul.f32 %v724, %v731
      %v734 = vlaneseq
      %v735 = vshrl.u32 %v734, 7
      %v736 = vsub.s32 0, %v735
      %v737 = vrot.slane %v716, %v736
      %v739 = vmul.f32 %v732, %v737
      %v741 = vlaneseq
      %v742 = vshrl.u32 %v741, 7
      %v743 = vsub.s32 0, %v742
      %v744 = vrot.slane %v717, %v743
      %v746 = vadd.f32 %v739, %v744
      %v747 = vpack.c.bf16 %v746, %v746
      %v748 = vld [vmem:[%s672] sm:$0xf]
      %v749 = vld [vmem:[%s672 + $0x4] sm:$0xf]
      %v750 = vld [vmem:[%s672 + $0x8] sm:$0xf]
      %v751 = vld [vmem:[%s672 + $0xc] sm:$0xf]
      %v756 = vunpack.c.l.b16 %v748
      %v757 = vunpack.c.l.b16 %v749
      %v758 = vunpack.c.l.b16 %v750
      %v759 = vunpack.c.l.b16 %v751
      %v760 = vpack.c.b16 %v757, %v756
      %v761 = vpack.c.b16 %v759, %v758
      %v765 = vsel %vm718, %v747, 0
      %767 = vmatprep.subr.bf16.mxu0 0
      %768 = vmatpush1.bf16.msra.mxu0 0
      %769 = vmatprep.subr.bf16.mxu0 0
      %770 = vmatpush1.bf16.msra.mxu0 0
      %771 = vmatprep.subr.bf16.mxu0 0
      %772 = vmatpush1.bf16.msra.mxu0 0
      %773 = vmatprep.subr.bf16.mxu0 0
      %774 = vmatpush1.bf16.msra.mxu0 0
      %775 = vmatprep.subr.bf16.mxu0 0
      %776 = vmatpush1.bf16.msra.mxu0 0
      %777 = vmatprep.subr.bf16.mxu0 0
      %778 = vmatpush1.bf16.msra.mxu0 0
      %779 = vmatprep.subr.bf16.mxu0 0
      %780 = vmatpush1.bf16.msra.mxu0 %v761
      %781 = vmatprep.subr.bf16.mxu0 0
      %782 = vmatpush1.bf16.msra.mxu0 %v760
      %783 = vmatprep.subr.bf16.mxu0 0
      %784 = vmatpush2.bf16.msra.mxu0 0
      %785 = vmatprep.subr.bf16.mxu0 0
      %786 = vmatpush2.bf16.msra.mxu0 0
      %787 = vmatprep.subr.bf16.mxu0 0
      %788 = vmatpush2.bf16.msra.mxu0 0
      %789 = vmatprep.subr.bf16.mxu0 0
      %790 = vmatpush2.bf16.msra.mxu0 0
      %791 = vmatprep.subr.bf16.mxu0 0
      %792 = vmatpush2.bf16.msra.mxu0 0
      %793 = vmatprep.subr.bf16.mxu0 0
      %794 = vmatpush2.bf16.msra.mxu0 0
      %795 = vmatprep.subr.bf16.mxu0 0
      %796 = vmatpush2.bf16.msra.mxu0 0
      %797 = vmatprep.subr.bf16.mxu0 0
      %798 = vmatpush2.bf16.msra.mxu0 0
      %799 = vmatprep.mubr.bf16.mxu0 0
      %800 = vmatmul.mubr.bf16.gmra.mxu0 %v765
      %v801 = vpop.f32.mrf.mxu0
      %v802 = vadd.f32 0.0, %v801
      %v803 = vpop.f32.mrf.mxu0
      %v804 = vpop.f32.mrf.mxu0
      %v805 = vpop.f32.mrf.mxu0
      %806 = vdwg.mxu0
      %v807 = vmul.f32 %v802, 0.35355338
      %v808 = vpack.c.bf16 %v807, %v807
      %v809 = vpack.c.bf16 %v802, %v802
      %811 = vrot.lane.b32.xlu0 %v809, 96
      %v812 = vpop.permute.xlu0 %811
      %vm813 = vcmask 64512
      %v815 = vsel %vm813, %v808, 0
      %v818 = vsel %vm813, %v812, 0
      %820 = vmatprep.subr.bf16.mxu0 0
      %821 = vmatpush1.bf16.xpose.msra.mxu0 0
      %822 = vmatprep.subr.bf16.mxu0 0
      %823 = vmatpush1.bf16.xpose.msra.mxu0 0
      %824 = vmatprep.subr.bf16.mxu0 0
      %825 = vmatpush1.bf16.xpose.msra.mxu0 0
      %826 = vmatprep.subr.bf16.mxu0 0
      %827 = vmatpush1.bf16.xpose.msra.mxu0 0
      %828 = vmatprep.subr.bf16.mxu0 0
      %829 = vmatpush1.bf16.xpose.msra.mxu0 0
      %830 = vmatprep.subr.bf16.mxu0 0
      %831 = vmatpush1.bf16.xpose.msra.mxu0 0
      %832 = vmatprep.subr.bf16.mxu0 0
      %833 = vmatpush1.bf16.xpose.msra.mxu0 0
      %834 = vmatprep.subr.bf16.mxu0 0
      %835 = vmatpush1.bf16.xpose.msra.mxu0 %v818
      %836 = vmatprep.subr.bf16.mxu0 0
      %837 = vmatpush2.bf16.xpose.msra.mxu0 0
      %838 = vmatprep.subr.bf16.mxu0 0
      %839 = vmatpush2.bf16.xpose.msra.mxu0 0
      %840 = vmatprep.subr.bf16.mxu0 0
      %841 = vmatpush2.bf16.xpose.msra.mxu0 0
      %842 = vmatprep.subr.bf16.mxu0 0
      %843 = vmatpush2.bf16.xpose.msra.mxu0 0
      %844 = vmatprep.subr.bf16.mxu0 0
      %845 = vmatpush2.bf16.xpose.msra.mxu0 0
      %846 = vmatprep.subr.bf16.mxu0 0
      %847 = vmatpush2.bf16.xpose.msra.mxu0 0
      %848 = vmatprep.subr.bf16.mxu0 0
      %849 = vmatpush2.bf16.xpose.msra.mxu0 0
      %850 = vmatprep.subr.bf16.mxu0 0
      %851 = vmatpush2.bf16.xpose.msra.mxu0 0
      %852 = vmatprep.mubr.bf16.mxu0 0
      %853 = vmatmul.mubr.bf16.gmra.mxu0 %v815
      %v854 = vpop.f32.mrf.mxu0
      %v855 = vadd.f32 0.0, %v854
      %v856 = vpop.f32.mrf.mxu0
      %v857 = vpop.f32.mrf.mxu0
      %v858 = vpop.f32.mrf.mxu0
      %859 = vdwg.mxu0
      %v860 = vsel %vm813, %v855, -inf
      %861 = vmax.xlane.f32.xlu0 %v860
      %v862 = vpop.xlane.xlu0 %861
      %v863 = vsub.f32 %v855, %v862
      %v864 = vmul.f32 %v863, 1.442695
      %v865 = vpow.pop %v864
      %v866 = vsel %vm813, %v865, 0.0
      %867 = vadd.xlane.f32.xlu0 %v866
      %v868 = vpop.xlane.xlu0 %867
      %v869 = vrcp.pop %v868
      %v870 = vmul.f32 %v865, %v869
      %v871 = vpack.c.bf16 %v870, %v870
      %872 = vrot.lane.b32.xlu0 %v809, 64
      %v873 = vpop.permute.xlu0 %872
      %v875 = vsel %vm813, %v871, 0
      %vm877 = vcmask 1043456
      %v879 = vsel %vm877, %v873, 0
      %881 = vmatprep.subr.bf16.mxu0 0
      %882 = vmatpush1.bf16.msra.mxu0 0
      %883 = vmatprep.subr.bf16.mxu0 0
      %884 = vmatpush1.bf16.msra.mxu0 0
      %885 = vmatprep.subr.bf16.mxu0 0
      %886 = vmatpush1.bf16.msra.mxu0 0
      %887 = vmatprep.subr.bf16.mxu0 0
      %888 = vmatpush1.bf16.msra.mxu0 0
      %889 = vmatprep.subr.bf16.mxu0 0
      %890 = vmatpush1.bf16.msra.mxu0 0
      %891 = vmatprep.subr.bf16.mxu0 0
      %892 = vmatpush1.bf16.msra.mxu0 0
      %893 = vmatprep.subr.bf16.mxu0 0
      %894 = vmatpush1.bf16.msra.mxu0 0
      %895 = vmatprep.subr.bf16.mxu0 0
      %896 = vmatpush1.bf16.msra.mxu0 %v879
      %897 = vmatprep.subr.bf16.mxu0 0
      %898 = vmatpush2.bf16.msra.mxu0 0
      %899 = vmatprep.subr.bf16.mxu0 0
      %900 = vmatpush2.bf16.msra.mxu0 0
      %901 = vmatprep.subr.bf16.mxu0 0
      %902 = vmatpush2.bf16.msra.mxu0 0
      %903 = vmatprep.subr.bf16.mxu0 0
      %904 = vmatpush2.bf16.msra.mxu0 0
      %905 = vmatprep.subr.bf16.mxu0 0
      %906 = vmatpush2.bf16.msra.mxu0 0
      %907 = vmatprep.subr.bf16.mxu0 0
      %908 = vmatpush2.bf16.msra.mxu0 0
      %909 = vmatprep.subr.bf16.mxu0 0
      %910 = vmatpush2.bf16.msra.mxu0 0
      %911 = vmatprep.subr.bf16.mxu0 0
      %912 = vmatpush2.bf16.msra.mxu0 0
      %913 = vmatprep.mubr.bf16.mxu0 0
      %914 = vmatmul.mubr.bf16.gmra.mxu0 %v875
      %v915 = vpop.f32.mrf.mxu0
      %v916 = vadd.f32 0.0, %v915
      %v917 = vpop.f32.mrf.mxu0
      %v918 = vpop.f32.mrf.mxu0
      %v919 = vpop.f32.mrf.mxu0
      %920 = vdwg.mxu0
      %921 = vst.msk [vmem:[#allocation3] sm:$0xff] %vm813, %v916
      %923 = vrot.lane.b32.xlu0 %v808, 120
      %v924 = vpop.permute.xlu0 %923
      %925 = vrot.lane.b32.xlu0 %v809, 88
      %v926 = vpop.permute.xlu0 %925
      %v928 = vsel %vm813, %v924, 0
      %v931 = vsel %vm813, %v926, 0
      %933 = vmatprep.subr.bf16.mxu0 0
      %934 = vmatpush1.bf16.xpose.msra.mxu0 0
      %935 = vmatprep.subr.bf16.mxu0 0
      %936 = vmatpush1.bf16.xpose.msra.mxu0 0
      %937 = vmatprep.subr.bf16.mxu0 0
      %938 = vmatpush1.bf16.xpose.msra.mxu0 0
      %939 = vmatprep.subr.bf16.mxu0 0
      %940 = vmatpush1.bf16.xpose.msra.mxu0 0
      %941 = vmatprep.subr.bf16.mxu0 0
      %942 = vmatpush1.bf16.xpose.msra.mxu0 0
      %943 = vmatprep.subr.bf16.mxu0 0
      %944 = vmatpush1.bf16.xpose.msra.mxu0 0
      %945 = vmatprep.subr.bf16.mxu0 0
      %946 = vmatpush1.bf16.xpose.msra.mxu0 0
      %947 = vmatprep.subr.bf16.mxu0 0
      %948 = vmatpush1.bf16.xpose.msra.mxu0 %v931
      %949 = vmatprep.subr.bf16.mxu0 0
      %950 = vmatpush2.bf16.xpose.msra.mxu0 0
      %951 = vmatprep.subr.bf16.mxu0 0
      %952 = vmatpush2.bf16.xpose.msra.mxu0 0
      %953 = vmatprep.subr.bf16.mxu0 0
      %954 = vmatpush2.bf16.xpose.msra.mxu0 0
      %955 = vmatprep.subr.bf16.mxu0 0
      %956 = vmatpush2.bf16.xpose.msra.mxu0 0
      %957 = vmatprep.subr.bf16.mxu0 0
      %958 = vmatpush2.bf16.xpose.msra.mxu0 0
      %959 = vmatprep.subr.bf16.mxu0 0
      %960 = vmatpush2.bf16.xpose.msra.mxu0 0
      %961 = vmatprep.subr.bf16.mxu0 0
      %962 = vmatpush2.bf16.xpose.msra.mxu0 0
      %963 = vmatprep.subr.bf16.mxu0 0
      %964 = vmatpush2.bf16.xpose.msra.mxu0 0
      %965 = vmatprep.mubr.bf16.mxu0 0
      %966 = vmatmul.mubr.bf16.gmra.mxu0 %v928
      %v967 = vpop.f32.mrf.mxu0
      %v968 = vadd.f32 0.0, %v967
      %v969 = vpop.f32.mrf.mxu0
      %v970 = vpop.f32.mrf.mxu0
      %v971 = vpop.f32.mrf.mxu0
      %972 = vdwg.mxu0
      %v973 = vsel %vm813, %v968, -inf
      %974 = vmax.xlane.f32.xlu0 %v973
      %v975 = vpop.xlane.xlu0 %974
      %v976 = vsub.f32 %v968, %v975
      %v977 = vmul.f32 %v976, 1.442695
      %v978 = vpow.pop %v977
      %v979 = vsel %vm813, %v978, 0.0
      %980 = vadd.xlane.f32.xlu0 %v979
      %v981 = vpop.xlane.xlu0 %980
      %v982 = vrcp.pop %v981
      %v983 = vmul.f32 %v978, %v982
      %v984 = vpack.c.bf16 %v983, %v983
      %985 = vrot.lane.b32.xlu0 %v809, 56
      %v986 = vpop.permute.xlu0 %985
      %v988 = vsel %vm813, %v984, 0
      %v991 = vsel %vm877, %v986, 0
      %993 = vmatprep.subr.bf16.mxu0 0
      %994 = vmatpush1.bf16.msra.mxu0 0
      %995 = vmatprep.subr.bf16.mxu0 0
      %996 = vmatpush1.bf16.msra.mxu0 0
      %997 = vmatprep.subr.bf16.mxu0 0
      %998 = vmatpush1.bf16.msra.mxu0 0
      %999 = vmatprep.subr.bf16.mxu0 0
      %1000 = vmatpush1.bf16.msra.mxu0 0
      %1001 = vmatprep.subr.bf16.mxu0 0
      %1002 = vmatpush1.bf16.msra.mxu0 0
      %1003 = vmatprep.subr.bf16.mxu0 0
      %1004 = vmatpush1.bf16.msra.mxu0 0
      %1005 = vmatprep.subr.bf16.mxu0 0
      %1006 = vmatpush1.bf16.msra.mxu0 0
      %1007 = vmatprep.subr.bf16.mxu0 0
      %1008 = vmatpush1.bf16.msra.mxu0 %v991
      %1009 = vmatprep.subr.bf16.mxu0 0
      %1010 = vmatpush2.bf16.msra.mxu0 0
      %1011 = vmatprep.subr.bf16.mxu0 0
      %1012 = vmatpush2.bf16.msra.mxu0 0
      %1013 = vmatprep.subr.bf16.mxu0 0
      %1014 = vmatpush2.bf16.msra.mxu0 0
      %1015 = vmatprep.subr.bf16.mxu0 0
      %1016 = vmatpush2.bf16.msra.mxu0 0
      %1017 = vmatprep.subr.bf16.mxu0 0
      %1018 = vmatpush2.bf16.msra.mxu0 0
      %1019 = vmatprep.subr.bf16.mxu0 0
      %1020 = vmatpush2.bf16.msra.mxu0 0
      %1021 = vmatprep.subr.bf16.mxu0 0
      %1022 = vmatpush2.bf16.msra.mxu0 0
      %1023 = vmatprep.subr.bf16.mxu0 0
      %1024 = vmatpush2.bf16.msra.mxu0 0
      %1025 = vmatprep.mubr.bf16.mxu0 0
      %1026 = vmatmul.mubr.bf16.gmra.mxu0 %v988
      %v1027 = vpop.f32.mrf.mxu0
      %v1028 = vadd.f32 0.0, %v1027
      %v1029 = vpop.f32.mrf.mxu0
      %v1030 = vpop.f32.mrf.mxu0
      %v1031 = vpop.f32.mrf.mxu0
      %1032 = vdwg.mxu0
      %1034 = vrot.lane.b32.xlu0 %v1028, 8
      %v1035 = vpop.permute.xlu0 %1034
      %vm1037 = vcmask 130112
      %1038 = vst.msk [vmem:[#allocation3] sm:$0xff] %vm1037, %v1035
      %1039 = vrot.lane.b32.xlu0 %v808, 112
      %v1040 = vpop.permute.xlu0 %1039
      %1041 = vrot.lane.b32.xlu0 %v809, 80
      %v1042 = vpop.permute.xlu0 %1041
      %v1044 = vsel %vm813, %v1040, 0
      %v1047 = vsel %vm813, %v1042, 0
      %1049 = vmatprep.subr.bf16.mxu0 0
      %1050 = vmatpush1.bf16.xpose.msra.mxu0 0
      %1051 = vmatprep.subr.bf16.mxu0 0
      %1052 = vmatpush1.bf16.xpose.msra.mxu0 0
      %1053 = vmatprep.subr.bf16.mxu0 0
      %1054 = vmatpush1.bf16.xpose.msra.mxu0 0
      %1055 = vmatprep.subr.bf16.mxu0 0
      %1056 = vmatpush1.bf16.xpose.msra.mxu0 0
      %1057 = vmatprep.subr.bf16.mxu0 0
      %1058 = vmatpush1.bf16.xpose.msra.mxu0 0
      %1059 = vmatprep.subr.bf16.mxu0 0
      %1060 = vmatpush1.bf16.xpose.msra.mxu0 0
      %1061 = vmatprep.subr.bf16.mxu0 0
      %1062 = vmatpush1.bf16.xpose.msra.mxu0 0
      %1063 = vmatprep.subr.bf16.mxu0 0
      %1064 = vmatpush1.bf16.xpose.msra.mxu0 %v1047
      %1065 = vmatprep.subr.bf16.mxu0 0
      %1066 = vmatpush2.bf16.xpose.msra.mxu0 0
      %1067 = vmatprep.subr.bf16.mxu0 0
      %1068 = vmatpush2.bf16.xpose.msra.mxu0 0
      %1069 = vmatprep.subr.bf16.mxu0 0
      %1070 = vmatpush2.bf16.xpose.msra.mxu0 0
      %1071 = vmatprep.subr.bf16.mxu0 0
      %1072 = vmatpush2.bf16.xpose.msra.mxu0 0
      %1073 = vmatprep.subr.bf16.mxu0 0
      %1074 = vmatpush2.bf16.xpose.msra.mxu0 0
      %1075 = vmatprep.subr.bf16.mxu0 0
      %1076 = vmatpush2.bf16.xpose.msra.mxu0 0
      %1077 = vmatprep.subr.bf16.mxu0 0
      %1078 = vmatpush2.bf16.xpose.msra.mxu0 0
      %1079 = vmatprep.subr.bf16.mxu0 0
      %1080 = vmatpush2.bf16.xpose.msra.mxu0 0
      %1081 = vmatprep.mubr.bf16.mxu0 0
      %1082 = vmatmul.mubr.bf16.gmra.mxu0 %v1044
      %v1083 = vpop.f32.mrf.mxu0
      %v1084 = vadd.f32 0.0, %v1083
      %v1085 = vpop.f32.mrf.mxu0
      %v1086 = vpop.f32.mrf.mxu0
      %v1087 = vpop.f32.mrf.mxu0
      %1088 = vdwg.mxu0
      %v1089 = vsel %vm813, %v1084, -inf
      %1090 = vmax.xlane.f32.xlu0 %v1089
      %v1091 = vpop.xlane.xlu0 %1090
      %v1092 = vsub.f32 %v1084, %v1091
      %v1093 = vmul.f32 %v1092, 1.442695
      %v1094 = vpow.pop %v1093
      %v1095 = vsel %vm813, %v1094, 0.0
      %1096 = vadd.xlane.f32.xlu0 %v1095
      %v1097 = vpop.xlane.xlu0 %1096
      %v1098 = vrcp.pop %v1097
      %v1099 = vmul.f32 %v1094, %v1098
      %v1100 = vpack.c.bf16 %v1099, %v1099
      %1101 = vrot.lane.b32.xlu0 %v809, 48
      %v1102 = vpop.permute.xlu0 %1101
      %v1104 = vsel %vm813, %v1100, 0
      %v1107 = vsel %vm877, %v1102, 0
      %1109 = vmatprep.subr.bf16.mxu0 0
      %1110 = vmatpush1.bf16.msra.mxu0 0
      %1111 = vmatprep.subr.bf16.mxu0 0
      %1112 = vmatpush1.bf16.msra.mxu0 0
      %1113 = vmatprep.subr.bf16.mxu0 0
      %1114 = vmatpush1.bf16.msra.mxu0 0
      %1115 = vmatprep.subr.bf16.mxu0 0
      %1116 = vmatpush1.bf16.msra.mxu0 0
      %1117 = vmatprep.subr.bf16.mxu0 0
      %1118 = vmatpush1.bf16.msra.mxu0 0
      %1119 = vmatprep.subr.bf16.mxu0 0
      %1120 = vmatpush1.bf16.msra.mxu0 0
      %1121 = vmatprep.subr.bf16.mxu0 0
      %1122 = vmatpush1.bf16.msra.mxu0 0
      %1123 = vmatprep.subr.bf16.mxu0 0
      %1124 = vmatpush1.bf16.msra.mxu0 %v1107
      %1125 = vmatprep.subr.bf16.mxu0 0
      %1126 = vmatpush2.bf16.msra.mxu0 0
      %1127 = vmatprep.subr.bf16.mxu0 0
      %1128 = vmatpush2.bf16.msra.mxu0 0
      %1129 = vmatprep.subr.bf16.mxu0 0
      %1130 = vmatpush2.bf16.msra.mxu0 0
      %1131 = vmatprep.subr.bf16.mxu0 0
      %1132 = vmatpush2.bf16.msra.mxu0 0
      %1133 = vmatprep.subr.bf16.mxu0 0
      %1134 = vmatpush2.bf16.msra.mxu0 0
      %1135 = vmatprep.subr.bf16.mxu0 0
      %1136 = vmatpush2.bf16.msra.mxu0 0
      %1137 = vmatprep.subr.bf16.mxu0 0
      %1138 = vmatpush2.bf16.msra.mxu0 0
      %1139 = vmatprep.subr.bf16.mxu0 0
      %1140 = vmatpush2.bf16.msra.mxu0 0
      %1141 = vmatprep.mubr.bf16.mxu0 0
      %1142 = vmatmul.mubr.bf16.gmra.mxu0 %v1104
      %v1143 = vpop.f32.mrf.mxu0
      %v1144 = vadd.f32 0.0, %v1143
      %v1145 = vpop.f32.mrf.mxu0
      %v1146 = vpop.f32.mrf.mxu0
      %v1147 = vpop.f32.mrf.mxu0
      %1148 = vdwg.mxu0
      %1150 = vrot.lane.b32.xlu0 %v1144, 16
      %v1151 = vpop.permute.xlu0 %1150
      %vm1153 = vcmask 195712
      %1154 = vst.msk [vmem:[#allocation3] sm:$0xff] %vm1153, %v1151
      %1155 = vrot.lane.b32.xlu0 %v808, 104
      %v1156 = vpop.permute.xlu0 %1155
      %1157 = vrot.lane.b32.xlu0 %v809, 72
      %v1158 = vpop.permute.xlu0 %1157
      %v1160 = vsel %vm813, %v1156, 0
      %v1163 = vsel %vm813, %v1158, 0
      %1165 = vmatprep.subr.bf16.mxu0 0
      %1166 = vmatpush1.bf16.xpose.msra.mxu0 0
      %1167 = vmatprep.subr.bf16.mxu0 0
      %1168 = vmatpush1.bf16.xpose.msra.mxu0 0
      %1169 = vmatprep.subr.bf16.mxu0 0
      %1170 = vmatpush1.bf16.xpose.msra.mxu0 0
      %1171 = vmatprep.subr.bf16.mxu0 0
      %1172 = vmatpush1.bf16.xpose.msra.mxu0 0
      %1173 = vmatprep.subr.bf16.mxu0 0
      %1174 = vmatpush1.bf16.xpose.msra.mxu0 0
      %1175 = vmatprep.subr.bf16.mxu0 0
      %1176 = vmatpush1.bf16.xpose.msra.mxu0 0
      %1177 = vmatprep.subr.bf16.mxu0 0
      %1178 = vmatpush1.bf16.xpose.msra.mxu0 0
      %1179 = vmatprep.subr.bf16.mxu0 0
      %1180 = vmatpush1.bf16.xpose.msra.mxu0 %v1163
      %1181 = vmatprep.subr.bf16.mxu0 0
      %1182 = vmatpush2.bf16.xpose.msra.mxu0 0
      %1183 = vmatprep.subr.bf16.mxu0 0
      %1184 = vmatpush2.bf16.xpose.msra.mxu0 0
      %1185 = vmatprep.subr.bf16.mxu0 0
      %1186 = vmatpush2.bf16.xpose.msra.mxu0 0
      %1187 = vmatprep.subr.bf16.mxu0 0
      %1188 = vmatpush2.bf16.xpose.msra.mxu0 0
      %1189 = vmatprep.subr.bf16.mxu0 0
      %1190 = vmatpush2.bf16.xpose.msra.mxu0 0
      %1191 = vmatprep.subr.bf16.mxu0 0
      %1192 = vmatpush2.bf16.xpose.msra.mxu0 0
      %1193 = vmatprep.subr.bf16.mxu0 0
      %1194 = vmatpush2.bf16.xpose.msra.mxu0 0
      %1195 = vmatprep.subr.bf16.mxu0 0
      %1196 = vmatpush2.bf16.xpose.msra.mxu0 0
      %1197 = vmatprep.mubr.bf16.mxu0 0
      %1198 = vmatmul.mubr.bf16.gmra.mxu0 %v1160
      %v1199 = vpop.f32.mrf.mxu0
      %v1200 = vadd.f32 0.0, %v1199
      %v1201 = vpop.f32.mrf.mxu0
      %v1202 = vpop.f32.mrf.mxu0
      %v1203 = vpop.f32.mrf.mxu0
      %1204 = vdwg.mxu0
      %v1205 = vsel %vm813, %v1200, -inf
      %1206 = vmax.xlane.f32.xlu0 %v1205
      %v1207 = vpop.xlane.xlu0 %1206
      %v1208 = vsub.f32 %v1200, %v1207
      %v1209 = vmul.f32 %v1208, 1.442695
      %v1210 = vpow.pop %v1209
      %v1211 = vsel %vm813, %v1210, 0.0
      %1212 = vadd.xlane.f32.xlu0 %v1211
      %v1213 = vpop.xlane.xlu0 %1212
      %v1214 = vrcp.pop %v1213
      %v1215 = vmul.f32 %v1210, %v1214
      %v1216 = vpack.c.bf16 %v1215, %v1215
      %1217 = vrot.lane.b32.xlu0 %v809, 40
      %v1218 = vpop.permute.xlu0 %1217
      %v1220 = vsel %vm813, %v1216, 0
      %v1223 = vsel %vm877, %v1218, 0
      %1225 = vmatprep.subr.bf16.mxu0 0
      %1226 = vmatpush1.bf16.msra.mxu0 0
      %1227 = vmatprep.subr.bf16.mxu0 0
      %1228 = vmatpush1.bf16.msra.mxu0 0
      %1229 = vmatprep.subr.bf16.mxu0 0
      %1230 = vmatpush1.bf16.msra.mxu0 0
      %1231 = vmatprep.subr.bf16.mxu0 0
      %1232 = vmatpush1.bf16.msra.mxu0 0
      %1233 = vmatprep.subr.bf16.mxu0 0
      %1234 = vmatpush1.bf16.msra.mxu0 0
      %1235 = vmatprep.subr.bf16.mxu0 0
      %1236 = vmatpush1.bf16.msra.mxu0 0
      %1237 = vmatprep.subr.bf16.mxu0 0
      %1238 = vmatpush1.bf16.msra.mxu0 0
      %1239 = vmatprep.subr.bf16.mxu0 0
      %1240 = vmatpush1.bf16.msra.mxu0 %v1223
      %1241 = vmatprep.subr.bf16.mxu0 0
      %1242 = vmatpush2.bf16.msra.mxu0 0
      %1243 = vmatprep.subr.bf16.mxu0 0
      %1244 = vmatpush2.bf16.msra.mxu0 0
      %1245 = vmatprep.subr.bf16.mxu0 0
      %1246 = vmatpush2.bf16.msra.mxu0 0
      %1247 = vmatprep.subr.bf16.mxu0 0
      %1248 = vmatpush2.bf16.msra.mxu0 0
      %1249 = vmatprep.subr.bf16.mxu0 0
      %1250 = vmatpush2.bf16.msra.mxu0 0
      %1251 = vmatprep.subr.bf16.mxu0 0
      %1252 = vmatpush2.bf16.msra.mxu0 0
      %1253 = vmatprep.subr.bf16.mxu0 0
      %1254 = vmatpush2.bf16.msra.mxu0 0
      %1255 = vmatprep.subr.bf16.mxu0 0
      %1256 = vmatpush2.bf16.msra.mxu0 0
      %1257 = vmatprep.mubr.bf16.mxu0 0
      %1258 = vmatmul.mubr.bf16.gmra.mxu0 %v1220
      %v1259 = vpop.f32.mrf.mxu0
      %v1260 = vadd.f32 0.0, %v1259
      %v1261 = vpop.f32.mrf.mxu0
      %v1262 = vpop.f32.mrf.mxu0
      %v1263 = vpop.f32.mrf.mxu0
      %1264 = vdwg.mxu0
      %1266 = vrot.lane.b32.xlu0 %v1260, 24
      %v1267 = vpop.permute.xlu0 %1266
      %vm1269 = vcmask 261312
      %1270 = vst.msk [vmem:[#allocation3] sm:$0xff] %vm1269, %v1267
      %v1271 = vld [vmem:[#allocation3] sm:$0xff]
      %v1272 = vpack.c.bf16 %v1271, %v1271
      %v1273 = vld [vmem:[%s677] sm:$0xf]
      %v1274 = vld [vmem:[%s677 + $0x4] sm:$0xf]
      %v1275 = vld [vmem:[%s677 + $0x8] sm:$0xf]
      %v1276 = vld [vmem:[%s677 + $0xc] sm:$0xf]
      %v1281 = vunpack.c.l.b16 %v1273
      %v1282 = vunpack.c.l.b16 %v1274
      %v1283 = vunpack.c.l.b16 %v1275
      %v1284 = vunpack.c.l.b16 %v1276
      %v1285 = vpack.c.b16 %v1282, %v1281
      %v1286 = vpack.c.b16 %v1284, %v1283
      %v1290 = vsel %vm718, %v1272, 0
      %1292 = vmatprep.subr.bf16.mxu0 0
      %1293 = vmatpush1.bf16.msra.mxu0 0
      %1294 = vmatprep.subr.bf16.mxu0 0
      %1295 = vmatpush1.bf16.msra.mxu0 0
      %1296 = vmatprep.subr.bf16.mxu0 0
      %1297 = vmatpush1.bf16.msra.mxu0 0
      %1298 = vmatprep.subr.bf16.mxu0 0
      %1299 = vmatpush1.bf16.msra.mxu0 0
      %1300 = vmatprep.subr.bf16.mxu0 0
      %1301 = vmatpush1.bf16.msra.mxu0 0
      %1302 = vmatprep.subr.bf16.mxu0 0
      %1303 = vmatpush1.bf16.msra.mxu0 0
      %1304 = vmatprep.subr.bf16.mxu0 0
      %1305 = vmatpush1.bf16.msra.mxu0 %v1286
      %1306 = vmatprep.subr.bf16.mxu0 0
      %1307 = vmatpush1.bf16.msra.mxu0 %v1285
      %1308 = vmatprep.subr.bf16.mxu0 0
      %1309 = vmatpush2.bf16.msra.mxu0 0
      %1310 = vmatprep.subr.bf16.mxu0 0
      %1311 = vmatpush2.bf16.msra.mxu0 0
      %1312 = vmatprep.subr.bf16.mxu0 0
      %1313 = vmatpush2.bf16.msra.mxu0 0
      %1314 = vmatprep.subr.bf16.mxu0 0
      %1315 = vmatpush2.bf16.msra.mxu0 0
      %1316 = vmatprep.subr.bf16.mxu0 0
      %1317 = vmatpush2.bf16.msra.mxu0 0
      %1318 = vmatprep.subr.bf16.mxu0 0
      %1319 = vmatpush2.bf16.msra.mxu0 0
      %1320 = vmatprep.subr.bf16.mxu0 0
      %1321 = vmatpush2.bf16.msra.mxu0 0
      %1322 = vmatprep.subr.bf16.mxu0 0
      %1323 = vmatpush2.bf16.msra.mxu0 0
      %1324 = vmatprep.mubr.bf16.mxu0 0
      %1325 = vmatmul.mubr.bf16.gmra.mxu0 %v1290
      %v1326 = vpop.f32.mrf.mxu0
      %v1327 = vadd.f32 0.0, %v1326
      %v1328 = vpop.f32.mrf.mxu0
      %v1329 = vpop.f32.mrf.mxu0
      %v1330 = vpop.f32.mrf.mxu0
      %1331 = vdwg.mxu0
      %v1332 = vadd.f32 %v715, %v1327
      %v1333 = vld [vmem:[%s680] sm:$0x1]
      %v1335 = vlaneseq
      %v1336 = vshrl.u32 %v1335, 7
      %v1337 = vsub.s32 0, %v1336
      %v1338 = vrot.slane %v1333, %v1337
      %v1340 = vadd.f32 %v1332, %v1338
      %v1341 = vld [vmem:[%s683] sm:$0x1]
      %v1342 = vld [vmem:[%s686] sm:$0x1]
      %v1343 = vsel %vm718, %v1340, 0.0
      %1344 = vadd.xlane.f32.xlu0 %v1343
      %v1345 = vpop.xlane.xlu0 %1344
      %v1346 = vmul.f32 %v1345, %v722
      %v1347 = vsub.f32 %v1340, %v1346
      %v1348 = vmul.f32 %v1347, %v1347
      %v1349 = vsel %vm718, %v1348, 0.0
      %1350 = vadd.xlane.f32.xlu0 %v1349
      %v1351 = vpop.xlane.xlu0 %1350
      %v1352 = vmul.f32 %v1351, %v722
      %v1353 = vadd.f32 %v1352, 1e-05
      %v1354 = vrsqrt.pop %v1353
      %v1355 = vmul.f32 %v1347, %v1354
      %v1357 = vlaneseq
      %v1358 = vshrl.u32 %v1357, 7
      %v1359 = vsub.s32 0, %v1358
      %v1360 = vrot.slane %v1341, %v1359
      %v1362 = vmul.f32 %v1355, %v1360
      %v1364 = vlaneseq
      %v1365 = vshrl.u32 %v1364, 7
      %v1366 = vsub.s32 0, %v1365
      %v1367 = vrot.slane %v1342, %v1366
      %v1369 = vadd.f32 %v1362, %v1367
      %v1370 = vpack.c.bf16 %v1369, %v1369
      %v1371 = vld [vmem:[%s691] sm:$0xf]
      %v1372 = vld [vmem:[%s691 + $0x4] sm:$0xf]
      %v1373 = vld [vmem:[%s691 + $0x8] sm:$0xf]
      %v1374 = vld [vmem:[%s691 + $0xc] sm:$0xf]
      %v1375 = vld [vmem:[%s694] sm:$0x1]
      %v1377 = vlaneseq
      %v1378 = vshrl.u32 %v1377, 7
      %v1379 = vsub.s32 0, %v1378
      %v1380 = vrot.slane %v1375, %v1379
      %v1386 = vunpack.c.l.b16 %v1371
      %v1387 = vunpack.c.l.b16 %v1372
      %v1388 = vunpack.c.l.b16 %v1373
      %v1389 = vunpack.c.l.b16 %v1374
      %v1390 = vpack.c.b16 %v1387, %v1386
      %v1391 = vpack.c.b16 %v1389, %v1388
      %v1395 = vsel %vm718, %v1370, 0
      %1397 = vmatprep.subr.bf16.mxu0 0
      %1398 = vmatpush1.bf16.msra.mxu0 0
      %1399 = vmatprep.subr.bf16.mxu0 0
      %1400 = vmatpush1.bf16.msra.mxu0 0
      %1401 = vmatprep.subr.bf16.mxu0 0
      %1402 = vmatpush1.bf16.msra.mxu0 0
      %1403 = vmatprep.subr.bf16.mxu0 0
      %1404 = vmatpush1.bf16.msra.mxu0 0
      %1405 = vmatprep.subr.bf16.mxu0 0
      %1406 = vmatpush1.bf16.msra.mxu0 0
      %1407 = vmatprep.subr.bf16.mxu0 0
      %1408 = vmatpush1.bf16.msra.mxu0 0
      %1409 = vmatprep.subr.bf16.mxu0 0
      %1410 = vmatpush1.bf16.msra.mxu0 %v1391
      %1411 = vmatprep.subr.bf16.mxu0 0
      %1412 = vmatpush1.bf16.msra.mxu0 %v1390
      %1413 = vmatprep.subr.bf16.mxu0 0
      %1414 = vmatpush2.bf16.msra.mxu0 0
      %1415 = vmatprep.subr.bf16.mxu0 0
      %1416 = vmatpush2.bf16.msra.mxu0 0
      %1417 = vmatprep.subr.bf16.mxu0 0
      %1418 = vmatpush2.bf16.msra.mxu0 0
      %1419 = vmatprep.subr.bf16.mxu0 0
      %1420 = vmatpush2.bf16.msra.mxu0 0
      %1421 = vmatprep.subr.bf16.mxu0 0
      %1422 = vmatpush2.bf16.msra.mxu0 0
      %1423 = vmatprep.subr.bf16.mxu0 0
      %1424 = vmatpush2.bf16.msra.mxu0 0
      %1425 = vmatprep.subr.bf16.mxu0 0
      %1426 = vmatpush2.bf16.msra.mxu0 0
      %1427 = vmatprep.subr.bf16.mxu0 0
      %1428 = vmatpush2.bf16.msra.mxu0 0
      %1429 = vmatprep.mubr.bf16.mxu0 0
      %1430 = vmatmul.mubr.bf16.gmra.mxu0 %v1395
      %v1431 = vpop.f32.mrf.mxu0
      %v1432 = vadd.f32 %v1380, %v1431
      %v1433 = vpop.f32.mrf.mxu0
      %v1434 = vpop.f32.mrf.mxu0
      %v1435 = vpop.f32.mrf.mxu0
      %1436 = vdwg.mxu0
      %v1437 = vmul.f32 %v1432, 0.5
      %v1438 = vmul.f32 %v1432, 0.70710677
      %vm1439 = vcmp.ge.f32.partialorder %v1438, 0.0
      %v1440 = vsel %vm1439, 1.0, -1.0
      %v1441 = vand.u32 2147483647, %v1438
      %v1442 = vmul.f32 %v1441, 0.3275911
      %v1443 = vadd.f32 %v1442, 1.0
      %v1444 = vrcp.pop %v1443
      %v1445 = vmul.f32 %v1444, 1.0614054
      %v1446 = vadd.f32 %v1445, -1.4531521
      %v1447 = vmul.f32 %v1446, %v1444
      %v1448 = vadd.f32 %v1447, 1.4214138
      %v1449 = vmul.f32 %v1448, %v1444
      %v1450 = vadd.f32 %v1449, -0.28449672
      %v1451 = vmul.f32 %v1450, %v1444
      %v1452 = vadd.f32 %v1451, 0.2548296
      %v1453 = vmul.f32 %v1452, %v1444
      %v1454 = vsub.f32 0.0, %v1441
      %v1455 = vmul.f32 %v1454, %v1441
      %v1456 = vmul.f32 %v1455, 1.442695
      %v1457 = vpow.pop %v1456
      %v1458 = vmul.f32 %v1453, %v1457
      %v1459 = vsub.f32 1.0, %v1458
      %v1460 = vmul.f32 %v1440, %v1459
      %v1461 = vadd.f32 %v1460, 1.0
      %v1462 = vmul.f32 %v1437, %v1461
      %v1463 = vpack.c.bf16 %v1462, %v1462
      %v1464 = vld [vmem:[%s699] sm:$0xf]
      %v1465 = vld [vmem:[%s699 + $0x4] sm:$0xf]
      %v1466 = vld [vmem:[%s699 + $0x8] sm:$0xf]
      %v1467 = vld [vmem:[%s699 + $0xc] sm:$0xf]
      %v1468 = vld [vmem:[%s699 + $0x10] sm:$0xf]
      %v1469 = vld [vmem:[%s699 + $0x14] sm:$0xf]
      %v1470 = vld [vmem:[%s699 + $0x18] sm:$0xf]
      %v1471 = vld [vmem:[%s699 + $0x1c] sm:$0xf]
      %v1472 = vld [vmem:[%s699 + $0x20] sm:$0xf]
      %v1473 = vld [vmem:[%s699 + $0x24] sm:$0xf]
      %v1474 = vld [vmem:[%s699 + $0x28] sm:$0xf]
      %v1475 = vld [vmem:[%s699 + $0x2c] sm:$0xf]
      %v1476 = vld [vmem:[%s699 + $0x30] sm:$0xf]
      %v1477 = vld [vmem:[%s699 + $0x34] sm:$0xf]
      %v1478 = vld [vmem:[%s699 + $0x38] sm:$0xf]
      %v1479 = vld [vmem:[%s699 + $0x3c] sm:$0xf]
      %v1480 = vld [vmem:[%s702] sm:$0x1]
      %v1482 = vlaneseq
      %v1483 = vshrl.u32 %v1482, 7
      %v1484 = vsub.s32 0, %v1483
      %v1485 = vrot.slane %v1480, %v1484
      %v1503 = vunpack.c.l.b16 %v1464
      %v1504 = vunpack.c.l.b16 %v1465
      %v1505 = vunpack.c.l.b16 %v1466
      %v1506 = vunpack.c.l.b16 %v1467
      %v1507 = vunpack.c.l.b16 %v1468
      %v1508 = vunpack.c.l.b16 %v1469
      %v1509 = vunpack.c.l.b16 %v1470
      %v1510 = vunpack.c.l.b16 %v1471
      %v1511 = vunpack.c.l.b16 %v1472
      %v1512 = vunpack.c.l.b16 %v1473
      %v1513 = vunpack.c.l.b16 %v1474
      %v1514 = vunpack.c.l.b16 %v1475
      %v1515 = vunpack.c.l.b16 %v1476
      %v1516 = vunpack.c.l.b16 %v1477
      %v1517 = vunpack.c.l.b16 %v1478
      %v1518 = vunpack.c.l.b16 %v1479
      %v1519 = vpack.c.b16 %v1504, %v1503
      %v1520 = vpack.c.b16 %v1506, %v1505
      %v1521 = vpack.c.b16 %v1508, %v1507
      %v1522 = vpack.c.b16 %v1510, %v1509
      %v1523 = vpack.c.b16 %v1512, %v1511
      %v1524 = vpack.c.b16 %v1514, %v1513
      %v1525 = vpack.c.b16 %v1516, %v1515
      %v1526 = vpack.c.b16 %v1518, %v1517
      %1535 = vmatprep.subr.bf16.mxu0 0
      %1536 = vmatpush1.bf16.msra.mxu0 %v1526
      %1537 = vmatprep.subr.bf16.mxu0 0
      %1538 = vmatpush1.bf16.msra.mxu0 %v1525
      %1539 = vmatprep.subr.bf16.mxu0 0
      %1540 = vmatpush1.bf16.msra.mxu0 %v1524
      %1541 = vmatprep.subr.bf16.mxu0 0
      %1542 = vmatpush1.bf16.msra.mxu0 %v1523
      %1543 = vmatprep.subr.bf16.mxu0 0
      %1544 = vmatpush1.bf16.msra.mxu0 %v1522
      %1545 = vmatprep.subr.bf16.mxu0 0
      %1546 = vmatpush1.bf16.msra.mxu0 %v1521
      %1547 = vmatprep.subr.bf16.mxu0 0
      %1548 = vmatpush1.bf16.msra.mxu0 %v1520
      %1549 = vmatprep.subr.bf16.mxu0 0
      %1550 = vmatpush1.bf16.msra.mxu0 %v1519
      %1551 = vmatprep.subr.bf16.mxu0 0
      %1552 = vmatpush2.bf16.msra.mxu0 0
      %1553 = vmatprep.subr.bf16.mxu0 0
      %1554 = vmatpush2.bf16.msra.mxu0 0
      %1555 = vmatprep.subr.bf16.mxu0 0
      %1556 = vmatpush2.bf16.msra.mxu0 0
      %1557 = vmatprep.subr.bf16.mxu0 0
      %1558 = vmatpush2.bf16.msra.mxu0 0
      %1559 = vmatprep.subr.bf16.mxu0 0
      %1560 = vmatpush2.bf16.msra.mxu0 0
      %1561 = vmatprep.subr.bf16.mxu0 0
      %1562 = vmatpush2.bf16.msra.mxu0 0
      %1563 = vmatprep.subr.bf16.mxu0 0
      %1564 = vmatpush2.bf16.msra.mxu0 0
      %1565 = vmatprep.subr.bf16.mxu0 0
      %1566 = vmatpush2.bf16.msra.mxu0 0
      %1567 = vmatprep.mubr.bf16.mxu0 0
      %1568 = vmatmul.mubr.bf16.gmra.mxu0 %v1463
      %v1569 = vpop.f32.mrf.mxu0
      %v1570 = vadd.f32 %v1485, %v1569
      %v1571 = vpop.f32.mrf.mxu0
      %v1572 = vpop.f32.mrf.mxu0
      %v1573 = vpop.f32.mrf.mxu0
      %1574 = vdwg.mxu0
      %v1575 = vadd.f32 %v1340, %v1570
      %1576 = vst.msk [vmem:[#allocation2] sm:$0xff] %vm718, %v1575
      %p1577 = scmp.eq.s32.totalorder %s32, 1
      // Predicated region
      $region89: #{tpu_custom_call.1} parent=83 // pred_check
        %p1578 = pneg %p1577
      $region90: #{tpu_custom_call.1} parent=83 // pred_check_branch
        %1580 = sbr.rel (%p1578) target = $region92
      $region91: #{tpu_custom_call.1} parent=83 // pred_region
        %v1581 = vld [vmem:[%s12] sm:$0x1]
        %v1582 = vld [vmem:[%s13] sm:$0x1]
        %vm1583 = vcmask 261125
        %v1584 = vsel %vm1583, %v1575, 0.0
        %1585 = vadd.xlane.f32.xlu0 %v1584
        %v1586 = vpop.xlane.xlu0 %1585
        %v1587 = vmul.f32 %v1586, %v722
        %v1588 = vsub.f32 %v1575, %v1587
        %v1589 = vmul.f32 %v1588, %v1588
        %v1590 = vsel %vm1583, %v1589, 0.0
        %1591 = vadd.xlane.f32.xlu0 %v1590
        %v1592 = vpop.xlane.xlu0 %1591
        %v1593 = vmul.f32 %v1592, %v722
        %v1594 = vadd.f32 %v1593, 1e-05
        %v1595 = vrsqrt.pop %v1594
        %v1596 = vmul.f32 %v1588, %v1595
        %v1598 = vlaneseq
        %v1599 = vshrl.u32 %v1598, 7
        %v1600 = vsub.s32 0, %v1599
        %v1601 = vrot.slane %v1581, %v1600
        %v1603 = vmul.f32 %v1596, %v1601
        %v1605 = vlaneseq
        %v1606 = vshrl.u32 %v1605, 7
        %v1607 = vsub.s32 0, %v1606
        %v1608 = vrot.slane %v1582, %v1607
        %v1610 = vadd.f32 %v1603, %v1608
        %v1611 = vpack.c.bf16 %v1610, %v1610
        %v1612 = vld [vmem:[%s14] sm:$0xf]
        %v1613 = vld [vmem:[%s14 + $0x4] sm:$0xf]
        %v1614 = vld [vmem:[%s14 + $0x8] sm:$0xf]
        %v1615 = vld [vmem:[%s14 + $0xc] sm:$0xf]
        %v1616 = vld [vmem:[%s15] sm:$0x1]
        %v1618 = vlaneseq
        %v1619 = vshrl.u32 %v1618, 7
        %v1620 = vsub.s32 0, %v1619
        %v1621 = vrot.slane %v1616, %v1620
        %v1624 = vshrl.u32 %v1611, 16
        %v1626 = vrot.slane %v1624, 2
        %v1627 = vshll.u32 %v1611, 16
        %v1629 = vrot.slane %v1627, 3
        %v1630 = vor.u32 %v1626, %v1629
        %v1635 = vunpack.c.l.b16 %v1612
        %v1636 = vunpack.c.l.b16 %v1613
        %v1637 = vunpack.c.l.b16 %v1614
        %v1638 = vunpack.c.l.b16 %v1615
        %v1639 = vpack.c.b16 %v1636, %v1635
        %v1640 = vpack.c.b16 %v1638, %v1637
        %v1644 = vsel %vm718, %v1630, 0
        %1646 = vmatprep.subr.bf16.mxu0 0
        %1647 = vmatpush1.bf16.msra.mxu0 0
        %1648 = vmatprep.subr.bf16.mxu0 0
        %1649 = vmatpush1.bf16.msra.mxu0 0
        %1650 = vmatprep.subr.bf16.mxu0 0
        %1651 = vmatpush1.bf16.msra.mxu0 0
        %1652 = vmatprep.subr.bf16.mxu0 0
        %1653 = vmatpush1.bf16.msra.mxu0 0
        %1654 = vmatprep.subr.bf16.mxu0 0
        %1655 = vmatpush1.bf16.msra.mxu0 0
        %1656 = vmatprep.subr.bf16.mxu0 0
        %1657 = vmatpush1.bf16.msra.mxu0 0
        %1658 = vmatprep.subr.bf16.mxu0 0
        %1659 = vmatpush1.bf16.msra.mxu0 %v1640
        %1660 = vmatprep.subr.bf16.mxu0 0
        %1661 = vmatpush1.bf16.msra.mxu0 %v1639
        %1662 = vmatprep.subr.bf16.mxu0 0
        %1663 = vmatpush2.bf16.msra.mxu0 0
        %1664 = vmatprep.subr.bf16.mxu0 0
        %1665 = vmatpush2.bf16.msra.mxu0 0
        %1666 = vmatprep.subr.bf16.mxu0 0
        %1667 = vmatpush2.bf16.msra.mxu0 0
        %1668 = vmatprep.subr.bf16.mxu0 0
        %1669 = vmatpush2.bf16.msra.mxu0 0
        %1670 = vmatprep.subr.bf16.mxu0 0
        %1671 = vmatpush2.bf16.msra.mxu0 0
        %1672 = vmatprep.subr.bf16.mxu0 0
        %1673 = vmatpush2.bf16.msra.mxu0 0
        %1674 = vmatprep.subr.bf16.mxu0 0
        %1675 = vmatpush2.bf16.msra.mxu0 0
        %1676 = vmatprep.subr.bf16.mxu0 0
        %1677 = vmatpush2.bf16.msra.mxu0 0
        %1678 = vmatprep.mubr.bf16.mxu0 0
        %1679 = vmatmul.mubr.bf16.gmra.mxu0 %v1644
        %v1680 = vpop.f32.mrf.mxu0
        %v1681 = vadd.f32 %v1621, %v1680
        %v1682 = vpop.f32.mrf.mxu0
        %v1683 = vpop.f32.mrf.mxu0
        %v1684 = vpop.f32.mrf.mxu0
        %1685 = vdwg.mxu0
        %1686 = vst [vmem:[%s706] sm:$0x7] %v1681
      $region92: #{tpu_custom_call.1} parent=83 // pred_fallthru
        _
      %p1687 = scmp.lt.s32.totalorder %s31, 1
      %s1688 = scalar_select %p1687, %s31, 1
      %s1689 = smul.addr %s1688, 4
      %s1690 = scalar_lea.vmem %s16, %s1689
      // Predicated region
      $region93: #{tpu_custom_call.1} parent=83 // pred_check
        %p1691 = pneg %p453
      $region94: #{tpu_custom_call.1} parent=83 // pred_check_branch
        %1693 = sbr.rel (%p1691) target = $region96
      $region95: #{tpu_custom_call.1} parent=83 // pred_region
        _
      $region96: #{tpu_custom_call.1} parent=83 // pred_fallthru
        _
    $region84: #{tpu_custom_call.1} parent=5 // pred_fallthru
      _
    %p1694 = scmp.le.s32.totalorder 2, %s22
    // Predicated region
    $region97: #{tpu_custom_call.1} parent=5 // pred_check
      %p1695 = pneg %p1694
    $region98: #{tpu_custom_call.1} parent=5 // pred_check_branch
      %1697 = sbr.rel (%p1695) target = $region100
    $region99: #{tpu_custom_call.1} parent=5 // pred_region
      %s1698 = ssub.s32 %s22, 2
      // Predicated region
      $region101: #{tpu_custom_call.1} parent=99 // pred_check
        %p1699 = pneg %p459
      $region102: #{tpu_custom_call.1} parent=99 // pred_check_branch
        %1701 = sbr.rel (%p1699) target = $region104
      $region103: #{tpu_custom_call.1} parent=99 // pred_region
        %p1702 = scmp.lt.s32.totalorder %s33, 1
        %s1703 = scalar_select %p1702, %s33, 1
        %s1704 = smul.addr %s1703, 4
        %s1705 = scalar_lea.vmem %s16, %s1704
      $region104: #{tpu_custom_call.1} parent=99 // pred_fallthru
        _
    $region100: #{tpu_custom_call.1} parent=5 // pred_fallthru
      _
  $region6: #{tpu_custom_call.1} parent=0 // loop_footer
    %s26 = sadd.s32 1, %s22
  $region7: #{tpu_custom_call.1} parent=0 // loop_footer_branch
    %21 = sbr.rel target = $region3
  $region8: #{tpu_custom_call.1} parent=0 // loop_exit
    _

</llo_original>
